<compile_context>
chip_gen: v5e
topology: v5e:2x2
jax: 0.10.0
libtpu: 0.0.40
codegen_flags: <defaults>
</compile_context>

<pallas_src>
import functools

import jax
import jax.numpy as jnp
from jax.experimental import pallas as pl
from jax.experimental.pallas import tpu as pltpu

# Model hyper-parameters (match the torch module constructor / defaults)
D_MODEL = 32          # d_model
NHEAD = 4             # nhead
HEAD_DIM = D_MODEL // NHEAD
DIM_FF = 2048         # FFNLayer default dim_feedforward
INPUT_CHANNEL = 4     # stored but unused in the torch forward
EPS = 1e-5

SEQ_LEN = 8
BATCH = 2

# Row order of the packed per-channel vector array (one DMA instead of eight):
#   0: pre_norm.weight   1: pre_norm.bias
#   2: after_norm.weight 3: after_norm.bias
#   4: ffn.norm.weight   5: ffn.norm.bias
#   6: out_proj.bias     7: linear2.bias
VEC_PRE_G, VEC_PRE_B, VEC_AFT_G, VEC_AFT_B, VEC_FFN_G, VEC_FFN_B, VEC_BO, VEC_B2 = range(8)


def _layernorm(v, g, b):
    mu = jnp.mean(v, axis=-1, keepdims=True)
    var = jnp.mean(jnp.square(v - mu), axis=-1, keepdims=True)
    return (v - mu) * jax.lax.rsqrt(var + EPS) * g + b


def self_attn_kernel(n_batch,
                     x_ref, vecs_ref, bqkv_ref, b1_ref,
                     wqkv_ref, wo_ref, w1_ref, w2_ref,
                     o_ref, ho_scr):
    x = x_ref[...].astype(jnp.float32)                      # (R, E) with R = L*N
    R, E = x.shape

    vecs = vecs_ref[...]                                    # (8, E) packed per-channel vectors
    pre_g, pre_b = vecs[VEC_PRE_G:VEC_PRE_G + 1, :], vecs[VEC_PRE_B:VEC_PRE_B + 1, :]
    aft_g, aft_b = vecs[VEC_AFT_G:VEC_AFT_G + 1, :], vecs[VEC_AFT_B:VEC_AFT_B + 1, :]
    ffn_g, ffn_b = vecs[VEC_FFN_G:VEC_FFN_G + 1, :], vecs[VEC_FFN_B:VEC_FFN_B + 1, :]
    bo, b2 = vecs[VEC_BO:VEC_BO + 1, :], vecs[VEC_B2:VEC_B2 + 1, :]

    # pre_norm applied to query/key/value (same tensor)
    xn = _layernorm(x, pre_g, pre_b)

    # Fused QKV projection: one (R,E) x (E,3E) matmul, bf16 operands, f32 accumulation.
    qkv = jnp.dot(xn.astype(jnp.bfloat16), wqkv_ref[...],
                  preferred_element_type=jnp.float32) + bqkv_ref[...]
    q16 = qkv[:, :E].astype(jnp.bfloat16)
    k16 = qkv[:, E:2 * E].astype(jnp.bfloat16)
    v16 = qkv[:, 2 * E:].astype(jnp.bfloat16)

    # In-kernel batch-separation mask: row r = l*N + n belongs to batch r % N
    # (interleaved pattern).  Additive -1e30 is safe because every row always has
    # finite unmasked entries (its own batch), so max-subtraction never sees -inf - -inf.
    row = jax.lax.broadcasted_iota(jnp.int32, (R, R), 0)
    col = jax.lax.broadcasted_iota(jnp.int32, (R, R), 1)
    mask_bias = jnp.where((row % n_batch) == (col % n_batch), 0.0, -1e30).astype(jnp.float32)

    scale = 1.0 / (HEAD_DIM ** 0.5)
    for h in range(NHEAD):                                  # static unrolled loop, NHEAD = 4
        sl = slice(h * HEAD_DIM, (h + 1) * HEAD_DIM)
        qh, kh, vh = q16[:, sl], k16[:, sl], v16[:, sl]     # (R, hd)
        # q @ k^T without an explicit transpose (contract last dims on the MXU).
        s = jax.lax.dot_general(qh, kh, (((1,), (1,)), ((), ())),
                                preferred_element_type=jnp.float32) * scale + mask_bias
        s = s - jnp.max(s, axis=-1, keepdims=True)
        p = jnp.exp(s)
        # approx reciprocal -> EUP slot (VALU-free); rows sum to 1 only to ~1e-3.
        p = p * pl.reciprocal(jnp.sum(p, axis=-1, keepdims=True), approx=True)
        ho = jnp.dot(p.astype(jnp.bfloat16), vh, preferred_element_type=jnp.float32)
        # Stash this head's output at its lane offset; single fused wo matmul below.
        ho_scr[:, sl] = ho

    attn = jnp.dot(ho_scr[...].astype(jnp.bfloat16), wo_ref[...],
                   preferred_element_type=jnp.float32) + bo

    # after_norm(attn + x)
    y = _layernorm(attn + x, aft_g, aft_b)
    y16 = y.astype(jnp.bfloat16)

    # FFN: norm(y + linear2(relu(linear1(y)))), dropout = 0.0 -> identity.
    # Unchunked: two matmuls; h1 is (R, 2048) f32 which fits comfortably at R = 16.
    h1 = jnp.dot(y16, w1_ref[...], preferred_element_type=jnp.float32) + b1_ref[...]
    h1 = jnp.maximum(h1, 0.0)
    z = jnp.dot(h1.astype(jnp.bfloat16), w2_ref[...], preferred_element_type=jnp.float32) + b2

    out = _layernorm(y + z, ffn_g, ffn_b)
    o_ref[...] = out.astype(o_ref.dtype)


def self_attention_layer(x_lne, params):
    """x_lne: (L, N, E) float32 (PyTorch seq-first layout). Returns (L, N, E)."""
    L, N, E = x_lne.shape
    assert E == D_MODEL
    R = L * N
    # Contiguous flatten (no transpose): row r = l*N + n, batch id = r % N.
    x2d = x_lne.reshape(R, E)

    args = (x2d, params["vec_pack"], params["bqkv"], params["b1"],
            params["wqkv_t"], params["wo_t"], params["w1_t"], params["w2_t"])

    vmem_spec = pl.BlockSpec(memory_space=pltpu.MemorySpace.VMEM)

    # Rough cost hint so XLA can schedule around this tiny custom call.
    flops = (2 * R * E * 3 * E                 # QKV projection
             + NHEAD * 2 * 2 * R * R * HEAD_DIM  # scores + p@v
             + 2 * R * E * E                   # out projection
             + 2 * 2 * R * E * DIM_FF)         # FFN
    bytes_accessed = (x2d.size * 4 + params["vec_pack"].size * 4
                      + params["bqkv"].size * 4 + params["b1"].size * 4
                      + params["wqkv_t"].size * 2 + params["wo_t"].size * 2
                      + params["w1_t"].size * 2 + params["w2_t"].size * 2
                      + R * E * 4)
    transcendentals = NHEAD * R * R + NHEAD * R + 3 * R     # exp + recip + rsqrt

    out = pl.pallas_call(
        functools.partial(self_attn_kernel, N),
        out_shape=jax.ShapeDtypeStruct((R, E), x_lne.dtype),
        in_specs=[vmem_spec] * len(args),
        out_specs=vmem_spec,
        scratch_shapes=[pltpu.VMEM((R, E), jnp.float32)],   # head-output concat buffer
        cost_estimate=pl.CostEstimate(flops=flops,
                                      transcendentals=transcendentals,
                                      bytes_accessed=bytes_accessed),
    )(*args)

    return out.reshape(L, N, E)


def init_params(key):
    """Deterministic synthetic parameter init (xavier-uniform for 2-D weights)."""
    def xavier(k, shape):                                    # shape = (out, in) torch-style
        fan_out, fan_in = shape
        lim = (6.0 / (fan_in + fan_out)) ** 0.5
        return jax.random.uniform(k, shape, jnp.float32, -lim, lim)

    ks = jax.random.split(key, 4)
    in_proj = xavier(ks[0], (3 * D_MODEL, D_MODEL))          # nn.MultiheadAttention in_proj_weight
    wo = xavier(ks[1], (D_MODEL, D_MODEL))                   # out_proj.weight
    w1 = xavier(ks[2], (DIM_FF, D_MODEL))                    # linear1.weight
    w2 = xavier(ks[3], (D_MODEL, DIM_FF))                    # linear2.weight

    zeros_e = jnp.zeros((D_MODEL,), jnp.float32)
    ones_e = jnp.ones((D_MODEL,), jnp.float32)

    # Packed per-channel vectors (one DMA, one VMEM tile): see VEC_* row order.
    vec_pack = jnp.stack([ones_e, zeros_e,      # pre_norm g, b
                          ones_e, zeros_e,      # after_norm g, b
                          ones_e, zeros_e,      # ffn.norm g, b
                          zeros_e, zeros_e],    # out_proj bias, linear2 bias
                         axis=0)

    return {
        "vec_pack": vec_pack,
        "bqkv": jnp.zeros((1, 3 * D_MODEL), jnp.float32),    # in_proj_bias (zero-init)
        "b1": jnp.zeros((1, DIM_FF), jnp.float32),           # linear1 bias
        # Pre-transposed, bf16-stored matmul weights (MXU-native, halves parameter DMA).
        "wqkv_t": in_proj.T.astype(jnp.bfloat16),
        "wo_t": wo.T.astype(jnp.bfloat16),
        "w1_t": w1.T.astype(jnp.bfloat16),
        "w2_t": w2.T.astype(jnp.bfloat16),
    }


def reference(x_lne, p):
    """Pure-JAX f32 reference of the torch forward (same bf16-stored weights, upcast)."""
    def ln(v, g, b):
        mu = jnp.mean(v, axis=-1, keepdims=True)
        var = jnp.mean(jnp.square(v - mu), axis=-1, keepdims=True)
        return (v - mu) * jax.lax.rsqrt(var + EPS) * g + b

    vp = p["vec_pack"]
    pre_g, pre_b = vp[VEC_PRE_G], vp[VEC_PRE_B]
    aft_g, aft_b = vp[VEC_AFT_G], vp[VEC_AFT_B]
    ffn_g, ffn_b = vp[VEC_FFN_G], vp[VEC_FFN_B]
    bo, b2 = vp[VEC_BO], vp[VEC_B2]

    L, N, E = x_lne.shape
    x = x_lne.astype(jnp.float32)
    xn = ln(x, pre_g, pre_b)
    qkv = xn @ p["wqkv_t"].astype(jnp.float32) + p["bqkv"][0]
    q = qkv[..., :E].reshape(L, N, NHEAD, HEAD_DIM)
    k = qkv[..., E:2 * E].reshape(L, N, NHEAD, HEAD_DIM)
    v = qkv[..., 2 * E:].reshape(L, N, NHEAD, HEAD_DIM)
    s = jnp.einsum("qnhd,knhd->nhqk", q, k) / (HEAD_DIM ** 0.5)
    w = jax.nn.softmax(s, axis=-1)
    attn = jnp.einsum("nhqk,knhd->qnhd", w, v).reshape(L, N, E)
    attn = attn @ p["wo_t"].astype(jnp.float32) + bo
    y = ln(attn + x, aft_g, aft_b)
    h1 = jnp.maximum(y @ p["w1_t"].astype(jnp.float32) + p["b1"][0], 0.0)
    z = h1 @ p["w2_t"].astype(jnp.float32) + b2
    return ln(y + z, ffn_g, ffn_b)


if __name__ == "__main__":
    key = jax.random.PRNGKey(0)
    k_x, k_p = jax.random.split(key)

    # x follows nn.MultiheadAttention default layout: (seq_len, batch, d_model)
    x = jax.random.normal(k_x, (SEQ_LEN, BATCH, D_MODEL), jnp.float32)
    params = init_params(k_p)

    out = jax.block_until_ready(self_attention_layer(x, params))
    ref = reference(x, params)

    assert out.shape == (SEQ_LEN, BATCH, D_MODEL)
    # Tolerance covers bf16 activation casts at the MXU dots and the approx softmax
    # reciprocal (f32 accumulation keeps the error small).
    max_err = float(jnp.max(jnp.abs(out - ref)))
    assert jnp.allclose(out, ref, atol=3e-2, rtol=3e-2), f"mismatch vs JAX reference (max err {max_err})"

    print("KERNEL_OK")
</pallas_src>

<mosaic_0001>
module attributes {stable_mosaic.version = 11 : i64} {
  func.func @self_attn_kernel(%arg0: memref<16x32xf32, #tpu.memory_space<vmem>>, %arg1: memref<8x32xf32, #tpu.memory_space<vmem>>, %arg2: memref<1x96xf32, #tpu.memory_space<vmem>>, %arg3: memref<1x2048xf32, #tpu.memory_space<vmem>>, %arg4: memref<32x96xbf16, #tpu.memory_space<vmem>>, %arg5: memref<32x32xbf16, #tpu.memory_space<vmem>>, %arg6: memref<32x2048xbf16, #tpu.memory_space<vmem>>, %arg7: memref<2048x32xbf16, #tpu.memory_space<vmem>>, %arg8: memref<16x32xf32, #tpu.memory_space<vmem>>, %arg9: memref<16x32xf32, #tpu.memory_space<vmem>>) attributes {dimension_semantics = [], scalar_prefetch = 0 : i64, scratch_operands = 1 : i64, tpu.core_type = #tpu.core_type<tc>} {
    %c0 = arith.constant 0 : index
    %c0_0 = arith.constant 0 : index
    %0 = vector.load %arg0[%c0, %c0_0] : memref<16x32xf32, #tpu.memory_space<vmem>>, vector<16x32xf32>
    %c0_1 = arith.constant 0 : index
    %c0_2 = arith.constant 0 : index
    %1 = vector.load %arg1[%c0_1, %c0_2] : memref<8x32xf32, #tpu.memory_space<vmem>>, vector<8x32xf32>
    %2 = vector.extract_strided_slice %1 {offsets = [0, 0], sizes = [1, 32], strides = [1, 1]} : vector<8x32xf32> to vector<1x32xf32>
    %3 = vector.extract_strided_slice %1 {offsets = [1, 0], sizes = [1, 32], strides = [1, 1]} : vector<8x32xf32> to vector<1x32xf32>
    %4 = vector.extract_strided_slice %1 {offsets = [2, 0], sizes = [1, 32], strides = [1, 1]} : vector<8x32xf32> to vector<1x32xf32>
    %5 = vector.extract_strided_slice %1 {offsets = [3, 0], sizes = [1, 32], strides = [1, 1]} : vector<8x32xf32> to vector<1x32xf32>
    %6 = vector.extract_strided_slice %1 {offsets = [4, 0], sizes = [1, 32], strides = [1, 1]} : vector<8x32xf32> to vector<1x32xf32>
    %7 = vector.extract_strided_slice %1 {offsets = [5, 0], sizes = [1, 32], strides = [1, 1]} : vector<8x32xf32> to vector<1x32xf32>
    %8 = vector.extract_strided_slice %1 {offsets = [6, 0], sizes = [1, 32], strides = [1, 1]} : vector<8x32xf32> to vector<1x32xf32>
    %9 = vector.extract_strided_slice %1 {offsets = [7, 0], sizes = [1, 32], strides = [1, 1]} : vector<8x32xf32> to vector<1x32xf32>
    %cst = arith.constant dense<0.000000e+00> : vector<16xf32>
    %10 = vector.multi_reduction <add>, %0, %cst [1] : vector<16x32xf32> to vector<16xf32>
    %11 = vector.shape_cast %10 : vector<16xf32> to vector<16x1xf32>
    %cst_3 = arith.constant 3.200000e+01 : f32
    %12 = vector.broadcast %cst_3 : f32 to vector<16x1xf32>
    %13 = arith.divf %11, %12 : vector<16x1xf32>
    %14 = vector.broadcast %13 : vector<16x1xf32> to vector<16x32xf32>
    %15 = arith.subf %0, %14 : vector<16x32xf32>
    %16 = arith.mulf %15, %15 : vector<16x32xf32>
    %cst_4 = arith.constant dense<0.000000e+00> : vector<16xf32>
    %17 = vector.multi_reduction <add>, %16, %cst_4 [1] : vector<16x32xf32> to vector<16xf32>
    %18 = vector.shape_cast %17 : vector<16xf32> to vector<16x1xf32>
    %cst_5 = arith.constant 3.200000e+01 : f32
    %19 = vector.broadcast %cst_5 : f32 to vector<16x1xf32>
    %20 = arith.divf %18, %19 : vector<16x1xf32>
    %21 = vector.broadcast %13 : vector<16x1xf32> to vector<16x32xf32>
    %22 = arith.subf %0, %21 : vector<16x32xf32>
    %cst_6 = arith.constant 9.99999974E-6 : f32
    %23 = vector.broadcast %cst_6 : f32 to vector<16x1xf32>
    %24 = arith.addf %20, %23 : vector<16x1xf32>
    %25 = math.rsqrt %24 : vector<16x1xf32>
    %26 = vector.broadcast %25 : vector<16x1xf32> to vector<16x32xf32>
    %27 = arith.mulf %22, %26 : vector<16x32xf32>
    %28 = vector.broadcast %2 : vector<1x32xf32> to vector<16x32xf32>
    %29 = arith.mulf %27, %28 : vector<16x32xf32>
    %30 = vector.broadcast %3 : vector<1x32xf32> to vector<16x32xf32>
    %31 = arith.addf %29, %30 : vector<16x32xf32>
    %32 = arith.truncf %31 : vector<16x32xf32> to vector<16x32xbf16>
    %c0_7 = arith.constant 0 : index
    %c0_8 = arith.constant 0 : index
    %33 = vector.load %arg4[%c0_7, %c0_8] : memref<32x96xbf16, #tpu.memory_space<vmem>>, vector<32x96xbf16>
    %cst_9 = arith.constant dense<0.000000e+00> : vector<16x96xf32>
    %34 = tpu.matmul %32, %33, %cst_9 {dimension_numbers = #tpu.dot_dimension_numbers<[1], [0], [0], [1], [0, 0, 1, 1], [], []>} : vector<16x32xbf16>, vector<32x96xbf16>, vector<16x96xf32> -> vector<16x96xf32>
    %c0_10 = arith.constant 0 : index
    %c0_11 = arith.constant 0 : index
    %35 = vector.load %arg2[%c0_10, %c0_11] : memref<1x96xf32, #tpu.memory_space<vmem>>, vector<1x96xf32>
    %36 = vector.broadcast %35 : vector<1x96xf32> to vector<16x96xf32>
    %37 = arith.addf %34, %36 : vector<16x96xf32>
    %38 = vector.extract_strided_slice %37 {offsets = [0, 0], sizes = [16, 32], strides = [1, 1]} : vector<16x96xf32> to vector<16x32xf32>
    %39 = arith.truncf %38 : vector<16x32xf32> to vector<16x32xbf16>
    %40 = vector.extract_strided_slice %37 {offsets = [0, 32], sizes = [16, 32], strides = [1, 1]} : vector<16x96xf32> to vector<16x32xf32>
    %41 = arith.truncf %40 : vector<16x32xf32> to vector<16x32xbf16>
    %42 = vector.extract_strided_slice %37 {offsets = [0, 64], sizes = [16, 32], strides = [1, 1]} : vector<16x96xf32> to vector<16x32xf32>
    %43 = arith.truncf %42 : vector<16x32xf32> to vector<16x32xbf16>
    %44 = tpu.iota {dimensions = array<i32: 0>} : vector<16x16xi32>
    %45 = tpu.iota {dimensions = array<i32: 1>} : vector<16x16xi32>
    %c2_i32 = arith.constant 2 : i32
    %c0_i32 = arith.constant 0 : i32
    %46 = arith.cmpi eq, %c2_i32, %c0_i32 : i32
    %c1_i32 = arith.constant 1 : i32
    %47 = arith.select %46, %c1_i32, %c2_i32 : i32
    %48 = vector.broadcast %47 : i32 to vector<16x16xi32>
    %49 = arith.remsi %44, %48 : vector<16x16xi32>
    %c0_i32_12 = arith.constant 0 : i32
    %50 = vector.broadcast %c0_i32_12 : i32 to vector<16x16xi32>
    %51 = arith.cmpi ne, %49, %50 : vector<16x16xi32>
    %c0_i32_13 = arith.constant 0 : i32
    %52 = vector.broadcast %c0_i32_13 : i32 to vector<16x16xi32>
    %53 = arith.cmpi slt, %49, %52 : vector<16x16xi32>
    %c0_i32_14 = arith.constant 0 : i32
    %54 = arith.cmpi slt, %47, %c0_i32_14 : i32
    %55 = vector.broadcast %54 : i1 to vector<16x16xi1>
    %56 = vector.broadcast %55 : vector<16x16xi1> to vector<16x16xi1>
    %57 = arith.xori %53, %56 : vector<16x16xi1>
    %58 = arith.andi %57, %51 : vector<16x16xi1>
    %59 = vector.broadcast %47 : i32 to vector<16x16xi32>
    %60 = arith.addi %49, %59 : vector<16x16xi32>
    %61 = arith.select %58, %60, %49 : vector<16x16xi1>, vector<16x16xi32>
    %c2_i32_15 = arith.constant 2 : i32
    %c0_i32_16 = arith.constant 0 : i32
    %62 = arith.cmpi eq, %c2_i32_15, %c0_i32_16 : i32
    %c1_i32_17 = arith.constant 1 : i32
    %63 = arith.select %62, %c1_i32_17, %c2_i32_15 : i32
    %64 = vector.broadcast %63 : i32 to vector<16x16xi32>
    %65 = arith.remsi %45, %64 : vector<16x16xi32>
    %c0_i32_18 = arith.constant 0 : i32
    %66 = vector.broadcast %c0_i32_18 : i32 to vector<16x16xi32>
    %67 = arith.cmpi ne, %65, %66 : vector<16x16xi32>
    %c0_i32_19 = arith.constant 0 : i32
    %68 = vector.broadcast %c0_i32_19 : i32 to vector<16x16xi32>
    %69 = arith.cmpi slt, %65, %68 : vector<16x16xi32>
    %c0_i32_20 = arith.constant 0 : i32
    %70 = arith.cmpi slt, %63, %c0_i32_20 : i32
    %71 = vector.broadcast %70 : i1 to vector<16x16xi1>
    %72 = vector.broadcast %71 : vector<16x16xi1> to vector<16x16xi1>
    %73 = arith.xori %69, %72 : vector<16x16xi1>
    %74 = arith.andi %73, %67 : vector<16x16xi1>
    %75 = vector.broadcast %63 : i32 to vector<16x16xi32>
    %76 = arith.addi %65, %75 : vector<16x16xi32>
    %77 = arith.select %74, %76, %65 : vector<16x16xi1>, vector<16x16xi32>
    %78 = arith.cmpi eq, %61, %77 : vector<16x16xi32>
    %cst_21 = arith.constant 0.000000e+00 : f32
    %cst_22 = arith.constant -1.000000e+30 : f32
    %79 = vector.broadcast %cst_21 : f32 to vector<16x16xf32>
    %80 = vector.broadcast %cst_22 : f32 to vector<16x16xf32>
    %81 = arith.select %78, %79, %80 : vector<16x16xi1>, vector<16x16xf32>
    %82 = vector.extract_strided_slice %39 {offsets = [0, 0], sizes = [16, 8], strides = [1, 1]} : vector<16x32xbf16> to vector<16x8xbf16>
    %83 = vector.extract_strided_slice %41 {offsets = [0, 0], sizes = [16, 8], strides = [1, 1]} : vector<16x32xbf16> to vector<16x8xbf16>
    %84 = vector.extract_strided_slice %43 {offsets = [0, 0], sizes = [16, 8], strides = [1, 1]} : vector<16x32xbf16> to vector<16x8xbf16>
    %cst_23 = arith.constant dense<0.000000e+00> : vector<16x16xf32>
    %85 = tpu.matmul %82, %83, %cst_23 {dimension_numbers = #tpu.dot_dimension_numbers<[1], [1], [0], [0], [0, 0, 1, 0], [], []>} : vector<16x8xbf16>, vector<16x8xbf16>, vector<16x16xf32> -> vector<16x16xf32>
    %cst_24 = arith.constant 0.353553385 : f32
    %86 = vector.broadcast %cst_24 : f32 to vector<16x16xf32>
    %87 = arith.mulf %85, %86 : vector<16x16xf32>
    %88 = arith.addf %87, %81 : vector<16x16xf32>
    %cst_25 = arith.constant dense<0xFF800000> : vector<16xf32>
    %89 = vector.multi_reduction <maximumf>, %88, %cst_25 [1] : vector<16x16xf32> to vector<16xf32>
    %90 = vector.shape_cast %89 : vector<16xf32> to vector<16x1xf32>
    %91 = vector.broadcast %90 : vector<16x1xf32> to vector<16x16xf32>
    %92 = arith.subf %88, %91 : vector<16x16xf32>
    %93 = math.exp %92 : vector<16x16xf32>
    %cst_26 = arith.constant dense<0.000000e+00> : vector<16xf32>
    %94 = vector.multi_reduction <add>, %93, %cst_26 [1] : vector<16x16xf32> to vector<16xf32>
    %95 = vector.shape_cast %94 : vector<16xf32> to vector<16x1xf32>
    %96 = tpu.reciprocal %95 {approx = true} : vector<16x1xf32> -> vector<16x1xf32>
    %97 = vector.broadcast %96 : vector<16x1xf32> to vector<16x16xf32>
    %98 = arith.mulf %93, %97 : vector<16x16xf32>
    %99 = arith.truncf %98 : vector<16x16xf32> to vector<16x16xbf16>
    %cst_27 = arith.constant dense<0.000000e+00> : vector<16x8xf32>
    %100 = tpu.matmul %99, %84, %cst_27 {dimension_numbers = #tpu.dot_dimension_numbers<[1], [0], [0], [1], [0, 0, 1, 1], [], []>} : vector<16x16xbf16>, vector<16x8xbf16>, vector<16x8xf32> -> vector<16x8xf32>
    %c0_28 = arith.constant 0 : index
    %c0_29 = arith.constant 0 : index
    %101 = vector.load %arg9[%c0_28, %c0_29] : memref<16x32xf32, #tpu.memory_space<vmem>>, vector<16x8xf32>
    tpu.vector_store %arg9[%c0_28, %c0_29], %100 {strides = array<i32>} : memref<16x32xf32, #tpu.memory_space<vmem>>, vector<16x8xf32>,
    %102 = vector.extract_strided_slice %39 {offsets = [0, 8], sizes = [16, 8], strides = [1, 1]} : vector<16x32xbf16> to vector<16x8xbf16>
    %103 = vector.extract_strided_slice %41 {offsets = [0, 8], sizes = [16, 8], strides = [1, 1]} : vector<16x32xbf16> to vector<16x8xbf16>
    %104 = vector.extract_strided_slice %43 {offsets = [0, 8], sizes = [16, 8], strides = [1, 1]} : vector<16x32xbf16> to vector<16x8xbf16>
    %cst_30 = arith.constant dense<0.000000e+00> : vector<16x16xf32>
    %105 = tpu.matmul %102, %103, %cst_30 {dimension_numbers = #tpu.dot_dimension_numbers<[1], [1], [0], [0], [0, 0, 1, 0], [], []>} : vector<16x8xbf16>, vector<16x8xbf16>, vector<16x16xf32> -> vector<16x16xf32>
    %cst_31 = arith.constant 0.353553385 : f32
    %106 = vector.broadcast %cst_31 : f32 to vector<16x16xf32>
    %107 = arith.mulf %105, %106 : vector<16x16xf32>
    %108 = arith.addf %107, %81 : vector<16x16xf32>
    %cst_32 = arith.constant dense<0xFF800000> : vector<16xf32>
    %109 = vector.multi_reduction <maximumf>, %108, %cst_32 [1] : vector<16x16xf32> to vector<16xf32>
    %110 = vector.shape_cast %109 : vector<16xf32> to vector<16x1xf32>
    %111 = vector.broadcast %110 : vector<16x1xf32> to vector<16x16xf32>
    %112 = arith.subf %108, %111 : vector<16x16xf32>
    %113 = math.exp %112 : vector<16x16xf32>
    %cst_33 = arith.constant dense<0.000000e+00> : vector<16xf32>
    %114 = vector.multi_reduction <add>, %113, %cst_33 [1] : vector<16x16xf32> to vector<16xf32>
    %115 = vector.shape_cast %114 : vector<16xf32> to vector<16x1xf32>
    %116 = tpu.reciprocal %115 {approx = true} : vector<16x1xf32> -> vector<16x1xf32>
    %117 = vector.broadcast %116 : vector<16x1xf32> to vector<16x16xf32>
    %118 = arith.mulf %113, %117 : vector<16x16xf32>
    %119 = arith.truncf %118 : vector<16x16xf32> to vector<16x16xbf16>
    %cst_34 = arith.constant dense<0.000000e+00> : vector<16x8xf32>
    %120 = tpu.matmul %119, %104, %cst_34 {dimension_numbers = #tpu.dot_dimension_numbers<[1], [0], [0], [1], [0, 0, 1, 1], [], []>} : vector<16x16xbf16>, vector<16x8xbf16>, vector<16x8xf32> -> vector<16x8xf32>
    %c0_35 = arith.constant 0 : index
    %c8 = arith.constant 8 : index
    %121 = vector.load %arg9[%c0_35, %c8] : memref<16x32xf32, #tpu.memory_space<vmem>>, vector<16x8xf32>
    tpu.vector_store %arg9[%c0_35, %c8], %120 {strides = array<i32>} : memref<16x32xf32, #tpu.memory_space<vmem>>, vector<16x8xf32>,
    %122 = vector.extract_strided_slice %39 {offsets = [0, 16], sizes = [16, 8], strides = [1, 1]} : vector<16x32xbf16> to vector<16x8xbf16>
    %123 = vector.extract_strided_slice %41 {offsets = [0, 16], sizes = [16, 8], strides = [1, 1]} : vector<16x32xbf16> to vector<16x8xbf16>
    %124 = vector.extract_strided_slice %43 {offsets = [0, 16], sizes = [16, 8], strides = [1, 1]} : vector<16x32xbf16> to vector<16x8xbf16>
    %cst_36 = arith.constant dense<0.000000e+00> : vector<16x16xf32>
    %125 = tpu.matmul %122, %123, %cst_36 {dimension_numbers = #tpu.dot_dimension_numbers<[1], [1], [0], [0], [0, 0, 1, 0], [], []>} : vector<16x8xbf16>, vector<16x8xbf16>, vector<16x16xf32> -> vector<16x16xf32>
    %cst_37 = arith.constant 0.353553385 : f32
    %126 = vector.broadcast %cst_37 : f32 to vector<16x16xf32>
    %127 = arith.mulf %125, %126 : vector<16x16xf32>
    %128 = arith.addf %127, %81 : vector<16x16xf32>
    %cst_38 = arith.constant dense<0xFF800000> : vector<16xf32>
    %129 = vector.multi_reduction <maximumf>, %128, %cst_38 [1] : vector<16x16xf32> to vector<16xf32>
    %130 = vector.shape_cast %129 : vector<16xf32> to vector<16x1xf32>
    %131 = vector.broadcast %130 : vector<16x1xf32> to vector<16x16xf32>
    %132 = arith.subf %128, %131 : vector<16x16xf32>
    %133 = math.exp %132 : vector<16x16xf32>
    %cst_39 = arith.constant dense<0.000000e+00> : vector<16xf32>
    %134 = vector.multi_reduction <add>, %133, %cst_39 [1] : vector<16x16xf32> to vector<16xf32>
    %135 = vector.shape_cast %134 : vector<16xf32> to vector<16x1xf32>
    %136 = tpu.reciprocal %135 {approx = true} : vector<16x1xf32> -> vector<16x1xf32>
    %137 = vector.broadcast %136 : vector<16x1xf32> to vector<16x16xf32>
    %138 = arith.mulf %133, %137 : vector<16x16xf32>
    %139 = arith.truncf %138 : vector<16x16xf32> to vector<16x16xbf16>
    %cst_40 = arith.constant dense<0.000000e+00> : vector<16x8xf32>
    %140 = tpu.matmul %139, %124, %cst_40 {dimension_numbers = #tpu.dot_dimension_numbers<[1], [0], [0], [1], [0, 0, 1, 1], [], []>} : vector<16x16xbf16>, vector<16x8xbf16>, vector<16x8xf32> -> vector<16x8xf32>
    %c0_41 = arith.constant 0 : index
    %c16 = arith.constant 16 : index
    %141 = vector.load %arg9[%c0_41, %c16] : memref<16x32xf32, #tpu.memory_space<vmem>>, vector<16x8xf32>
    tpu.vector_store %arg9[%c0_41, %c16], %140 {strides = array<i32>} : memref<16x32xf32, #tpu.memory_space<vmem>>, vector<16x8xf32>,
    %142 = vector.extract_strided_slice %39 {offsets = [0, 24], sizes = [16, 8], strides = [1, 1]} : vector<16x32xbf16> to vector<16x8xbf16>
    %143 = vector.extract_strided_slice %41 {offsets = [0, 24], sizes = [16, 8], strides = [1, 1]} : vector<16x32xbf16> to vector<16x8xbf16>
    %144 = vector.extract_strided_slice %43 {offsets = [0, 24], sizes = [16, 8], strides = [1, 1]} : vector<16x32xbf16> to vector<16x8xbf16>
    %cst_42 = arith.constant dense<0.000000e+00> : vector<16x16xf32>
    %145 = tpu.matmul %142, %143, %cst_42 {dimension_numbers = #tpu.dot_dimension_numbers<[1], [1], [0], [0], [0, 0, 1, 0], [], []>} : vector<16x8xbf16>, vector<16x8xbf16>, vector<16x16xf32> -> vector<16x16xf32>
    %cst_43 = arith.constant 0.353553385 : f32
    %146 = vector.broadcast %cst_43 : f32 to vector<16x16xf32>
    %147 = arith.mulf %145, %146 : vector<16x16xf32>
    %148 = arith.addf %147, %81 : vector<16x16xf32>
    %cst_44 = arith.constant dense<0xFF800000> : vector<16xf32>
    %149 = vector.multi_reduction <maximumf>, %148, %cst_44 [1] : vector<16x16xf32> to vector<16xf32>
    %150 = vector.shape_cast %149 : vector<16xf32> to vector<16x1xf32>
    %151 = vector.broadcast %150 : vector<16x1xf32> to vector<16x16xf32>
    %152 = arith.subf %148, %151 : vector<16x16xf32>
    %153 = math.exp %152 : vector<16x16xf32>
    %cst_45 = arith.constant dense<0.000000e+00> : vector<16xf32>
    %154 = vector.multi_reduction <add>, %153, %cst_45 [1] : vector<16x16xf32> to vector<16xf32>
    %155 = vector.shape_cast %154 : vector<16xf32> to vector<16x1xf32>
    %156 = tpu.reciprocal %155 {approx = true} : vector<16x1xf32> -> vector<16x1xf32>
    %157 = vector.broadcast %156 : vector<16x1xf32> to vector<16x16xf32>
    %158 = arith.mulf %153, %157 : vector<16x16xf32>
    %159 = arith.truncf %158 : vector<16x16xf32> to vector<16x16xbf16>
    %cst_46 = arith.constant dense<0.000000e+00> : vector<16x8xf32>
    %160 = tpu.matmul %159, %144, %cst_46 {dimension_numbers = #tpu.dot_dimension_numbers<[1], [0], [0], [1], [0, 0, 1, 1], [], []>} : vector<16x16xbf16>, vector<16x8xbf16>, vector<16x8xf32> -> vector<16x8xf32>
    %c0_47 = arith.constant 0 : index
    %c24 = arith.constant 24 : index
    %161 = vector.load %arg9[%c0_47, %c24] : memref<16x32xf32, #tpu.memory_space<vmem>>, vector<16x8xf32>
    tpu.vector_store %arg9[%c0_47, %c24], %160 {strides = array<i32>} : memref<16x32xf32, #tpu.memory_space<vmem>>, vector<16x8xf32>,
    %c0_48 = arith.constant 0 : index
    %c0_49 = arith.constant 0 : index
    %162 = vector.load %arg9[%c0_48, %c0_49] : memref<16x32xf32, #tpu.memory_space<vmem>>, vector<16x32xf32>
    %163 = arith.truncf %162 : vector<16x32xf32> to vector<16x32xbf16>
    %c0_50 = arith.constant 0 : index
    %c0_51 = arith.constant 0 : index
    %164 = vector.load %arg5[%c0_50, %c0_51] : memref<32x32xbf16, #tpu.memory_space<vmem>>, vector<32x32xbf16>
    %cst_52 = arith.constant dense<0.000000e+00> : vector<16x32xf32>
    %165 = tpu.matmul %163, %164, %cst_52 {dimension_numbers = #tpu.dot_dimension_numbers<[1], [0], [0], [1], [0, 0, 1, 1], [], []>} : vector<16x32xbf16>, vector<32x32xbf16>, vector<16x32xf32> -> vector<16x32xf32>
    %166 = vector.broadcast %8 : vector<1x32xf32> to vector<16x32xf32>
    %167 = arith.addf %165, %166 : vector<16x32xf32>
    %168 = arith.addf %167, %0 : vector<16x32xf32>
    %cst_53 = arith.constant dense<0.000000e+00> : vector<16xf32>
    %169 = vector.multi_reduction <add>, %168, %cst_53 [1] : vector<16x32xf32> to vector<16xf32>
    %170 = vector.shape_cast %169 : vector<16xf32> to vector<16x1xf32>
    %cst_54 = arith.constant 3.200000e+01 : f32
    %171 = vector.broadcast %cst_54 : f32 to vector<16x1xf32>
    %172 = arith.divf %170, %171 : vector<16x1xf32>
    %173 = vector.broadcast %172 : vector<16x1xf32> to vector<16x32xf32>
    %174 = arith.subf %168, %173 : vector<16x32xf32>
    %175 = arith.mulf %174, %174 : vector<16x32xf32>
    %cst_55 = arith.constant dense<0.000000e+00> : vector<16xf32>
    %176 = vector.multi_reduction <add>, %175, %cst_55 [1] : vector<16x32xf32> to vector<16xf32>
    %177 = vector.shape_cast %176 : vector<16xf32> to vector<16x1xf32>
    %cst_56 = arith.constant 3.200000e+01 : f32
    %178 = vector.broadcast %cst_56 : f32 to vector<16x1xf32>
    %179 = arith.divf %177, %178 : vector<16x1xf32>
    %180 = vector.broadcast %172 : vector<16x1xf32> to vector<16x32xf32>
    %181 = arith.subf %168, %180 : vector<16x32xf32>
    %cst_57 = arith.constant 9.99999974E-6 : f32
    %182 = vector.broadcast %cst_57 : f32 to vector<16x1xf32>
    %183 = arith.addf %179, %182 : vector<16x1xf32>
    %184 = math.rsqrt %183 : vector<16x1xf32>
    %185 = vector.broadcast %184 : vector<16x1xf32> to vector<16x32xf32>
    %186 = arith.mulf %181, %185 : vector<16x32xf32>
    %187 = vector.broadcast %4 : vector<1x32xf32> to vector<16x32xf32>
    %188 = arith.mulf %186, %187 : vector<16x32xf32>
    %189 = vector.broadcast %5 : vector<1x32xf32> to vector<16x32xf32>
    %190 = arith.addf %188, %189 : vector<16x32xf32>
    %191 = arith.truncf %190 : vector<16x32xf32> to vector<16x32xbf16>
    %c0_58 = arith.constant 0 : index
    %c0_59 = arith.constant 0 : index
    %192 = vector.load %arg6[%c0_58, %c0_59] : memref<32x2048xbf16, #tpu.memory_space<vmem>>, vector<32x2048xbf16>
    %cst_60 = arith.constant dense<0.000000e+00> : vector<16x2048xf32>
    %193 = tpu.matmul %191, %192, %cst_60 {dimension_numbers = #tpu.dot_dimension_numbers<[1], [0], [0], [1], [0, 0, 1, 1], [], []>} : vector<16x32xbf16>, vector<32x2048xbf16>, vector<16x2048xf32> -> vector<16x2048xf32>
    %c0_61 = arith.constant 0 : index
    %c0_62 = arith.constant 0 : index
    %194 = vector.load %arg3[%c0_61, %c0_62] : memref<1x2048xf32, #tpu.memory_space<vmem>>, vector<1x2048xf32>
    %195 = vector.broadcast %194 : vector<1x2048xf32> to vector<16x2048xf32>
    %196 = arith.addf %193, %195 : vector<16x2048xf32>
    %cst_63 = arith.constant 0.000000e+00 : f32
    %197 = vector.broadcast %cst_63 : f32 to vector<16x2048xf32>
    %198 = arith.maximumf %196, %197 : vector<16x2048xf32>
    %199 = arith.truncf %198 : vector<16x2048xf32> to vector<16x2048xbf16>
    %c0_64 = arith.constant 0 : index
    %c0_65 = arith.constant 0 : index
    %200 = vector.load %arg7[%c0_64, %c0_65] : memref<2048x32xbf16, #tpu.memory_space<vmem>>, vector<2048x32xbf16>
    %cst_66 = arith.constant dense<0.000000e+00> : vector<16x32xf32>
    %201 = tpu.matmul %199, %200, %cst_66 {dimension_numbers = #tpu.dot_dimension_numbers<[1], [0], [0], [1], [0, 0, 1, 1], [], []>} : vector<16x2048xbf16>, vector<2048x32xbf16>, vector<16x32xf32> -> vector<16x32xf32>
    %202 = vector.broadcast %9 : vector<1x32xf32> to vector<16x32xf32>
    %203 = arith.addf %201, %202 : vector<16x32xf32>
    %204 = arith.addf %190, %203 : vector<16x32xf32>
    %cst_67 = arith.constant dense<0.000000e+00> : vector<16xf32>
    %205 = vector.multi_reduction <add>, %204, %cst_67 [1] : vector<16x32xf32> to vector<16xf32>
    %206 = vector.shape_cast %205 : vector<16xf32> to vector<16x1xf32>
    %cst_68 = arith.constant 3.200000e+01 : f32
    %207 = vector.broadcast %cst_68 : f32 to vector<16x1xf32>
    %208 = arith.divf %206, %207 : vector<16x1xf32>
    %209 = vector.broadcast %208 : vector<16x1xf32> to vector<16x32xf32>
    %210 = arith.subf %204, %209 : vector<16x32xf32>
    %211 = arith.mulf %210, %210 : vector<16x32xf32>
    %cst_69 = arith.constant dense<0.000000e+00> : vector<16xf32>
    %212 = vector.multi_reduction <add>, %211, %cst_69 [1] : vector<16x32xf32> to vector<16xf32>
    %213 = vector.shape_cast %212 : vector<16xf32> to vector<16x1xf32>
    %cst_70 = arith.constant 3.200000e+01 : f32
    %214 = vector.broadcast %cst_70 : f32 to vector<16x1xf32>
    %215 = arith.divf %213, %214 : vector<16x1xf32>
    %216 = vector.broadcast %208 : vector<16x1xf32> to vector<16x32xf32>
    %217 = arith.subf %204, %216 : vector<16x32xf32>
    %cst_71 = arith.constant 9.99999974E-6 : f32
    %218 = vector.broadcast %cst_71 : f32 to vector<16x1xf32>
    %219 = arith.addf %215, %218 : vector<16x1xf32>
    %220 = math.rsqrt %219 : vector<16x1xf32>
    %221 = vector.broadcast %220 : vector<16x1xf32> to vector<16x32xf32>
    %222 = arith.mulf %217, %221 : vector<16x32xf32>
    %223 = vector.broadcast %6 : vector<1x32xf32> to vector<16x32xf32>
    %224 = arith.mulf %222, %223 : vector<16x32xf32>
    %225 = vector.broadcast %7 : vector<1x32xf32> to vector<16x32xf32>
    %226 = arith.addf %224, %225 : vector<16x32xf32>
    %c0_72 = arith.constant 0 : index
    %c0_73 = arith.constant 0 : index
    %227 = vector.load %arg8[%c0_72, %c0_73] : memref<16x32xf32, #tpu.memory_space<vmem>>, vector<16x32xf32>
    tpu.vector_store %arg8[%c0_72, %c0_73], %226 {strides = array<i32>} : memref<16x32xf32, #tpu.memory_space<vmem>>, vector<16x32xf32>,
    return
  }
}

</mosaic_0001>

<llo_original>
// kernel: tpu_custom_call.1
$region0: #{tpu_custom_call.1}
  #allocation0 [shape = 'u32[]', space=smem, size = 0x4, offset = 0x4, fixed_abs, tag = 'smem constant byte address 0x4 - core index']
  #allocation1 [shape = 'u32[72,128]{1,0:T(1,128)}', space=vmem, size = 0x9000, scoped, tag = 'internal scratch']
  #allocation2 [shape = 'f32[16,32]{1,0:T(8,128)}', space=vmem, size = 0x2000, scoped, tag = 'scratch operand']
  %s0 = inlined_call_operand.vmem [shape: f32[16,32], index: 0, kind: input, shape index: {}]
  %s1 = inlined_call_operand.vmem [shape: f32[8,32], index: 1, kind: input, shape index: {}]
  %s2 = inlined_call_operand.vmem [shape: f32[1,96], index: 2, kind: input, shape index: {}]
  %s3 = inlined_call_operand.vmem [shape: f32[1,2048], index: 3, kind: input, shape index: {}]
  %s4 = inlined_call_operand.vmem [shape: bf16[32,96], index: 4, kind: input, shape index: {}]
  %s5 = inlined_call_operand.vmem [shape: bf16[32,32], index: 5, kind: input, shape index: {}]
  %s6 = inlined_call_operand.vmem [shape: bf16[32,2048], index: 6, kind: input, shape index: {}]
  %s7 = inlined_call_operand.vmem [shape: bf16[2048,32], index: 7, kind: input, shape index: {}]
  %s8 = inlined_call_operand.hbm [shape: f32[16,32], index: 8, kind: output, shape index: {}]
  %s9 = sld [smem:[#allocation0]]
  $region42: #{tpu_custom_call.1} parent=0
    _
  %s11 = ssub.s32 1, %s9
  %s12 = scalar_select 0, %s11, %s9
  $region1: #{tpu_custom_call.1} parent=0
    #allocation3 [shape = 'u8[8192]{0}', space=vmem, size = 0x2000, scoped, tag = 'output window, operand 0, single buffered']
    #allocation4 [shape = 's32[1]{0}', space=sflag, size = 0x4, scoped, tag = 'scoped memory for tpu_custom_call.1']
    %13 = vsyncpa [#allocation4], 0
    // Predicated region
    $region2: #{tpu_custom_call.1} parent=1 // pred_check
      _
    $region3: #{tpu_custom_call.1} parent=1 // pred_check_branch
      %15 = sbr.rel (0) target = $region5
    $region4: #{tpu_custom_call.1} parent=1 // pred_region
      _
    $region5: #{tpu_custom_call.1} parent=1 // pred_fallthru
      _
    // Predicated region
    $region6: #{tpu_custom_call.1} parent=1 // pred_check
      _
    $region7: #{tpu_custom_call.1} parent=1 // pred_check_branch
      %17 = sbr.rel (0) target = $region9
    $region8: #{tpu_custom_call.1} parent=1 // pred_region
      _
    $region9: #{tpu_custom_call.1} parent=1 // pred_fallthru
      _
    // Predicated region
    $region10: #{tpu_custom_call.1} parent=1 // pred_check
      _
    $region11: #{tpu_custom_call.1} parent=1 // pred_check_branch
      %19 = sbr.rel (0) target = $region13
    $region12: #{tpu_custom_call.1} parent=1 // pred_region
      _
    $region13: #{tpu_custom_call.1} parent=1 // pred_fallthru
      _
    // Predicated region
    $region14: #{tpu_custom_call.1} parent=1 // pred_check
      _
    $region15: #{tpu_custom_call.1} parent=1 // pred_check_branch
      %21 = sbr.rel (0) target = $region17
    $region16: #{tpu_custom_call.1} parent=1 // pred_region
      _
    $region17: #{tpu_custom_call.1} parent=1 // pred_fallthru
      _
    // Predicated region
    $region18: #{tpu_custom_call.1} parent=1 // pred_check
      _
    $region19: #{tpu_custom_call.1} parent=1 // pred_check_branch
      %23 = sbr.rel (0) target = $region21
    $region20: #{tpu_custom_call.1} parent=1 // pred_region
      _
    $region21: #{tpu_custom_call.1} parent=1 // pred_fallthru
      _
    // Predicated region
    $region22: #{tpu_custom_call.1} parent=1 // pred_check
      _
    $region23: #{tpu_custom_call.1} parent=1 // pred_check_branch
      %25 = sbr.rel (0) target = $region25
    $region24: #{tpu_custom_call.1} parent=1 // pred_region
      _
    $region25: #{tpu_custom_call.1} parent=1 // pred_fallthru
      _
    // Predicated region
    $region26: #{tpu_custom_call.1} parent=1 // pred_check
      _
    $region27: #{tpu_custom_call.1} parent=1 // pred_check_branch
      %27 = sbr.rel (0) target = $region29
    $region28: #{tpu_custom_call.1} parent=1 // pred_region
      _
    $region29: #{tpu_custom_call.1} parent=1 // pred_fallthru
      _
    // Predicated region
    $region30: #{tpu_custom_call.1} parent=1 // pred_check
      _
    $region31: #{tpu_custom_call.1} parent=1 // pred_check_branch
      %29 = sbr.rel (0) target = $region33
    $region32: #{tpu_custom_call.1} parent=1 // pred_region
      _
    $region33: #{tpu_custom_call.1} parent=1 // pred_fallthru
      _
    %v31 = vld [vmem:[%s0] sm:$0xff]
    %v32 = vld [vmem:[%s0 + $0x8] sm:$0xff]
    %v33 = vld [vmem:[%s1] sm:$0xff]
    %vm34 = vcmask 261120
    %v35 = vsel %vm34, %v31, 0.0
    %36 = vadd.xlane.f32.xlu0 %v35
    %v37 = vpop.xlane.xlu0 %36
    %v38 = vsel %vm34, %v32, 0.0
    %39 = vadd.xlane.f32.xlu0 %v38
    %v40 = vpop.xlane.xlu0 %39
    %v41 = vrcp.pop 32.0
    %v42 = vmul.f32 32.0, %v41
    %v43 = vsub.f32 1.0, %v42
    %v44 = vmul.f32 %v41, %v43
    %v45 = vadd.f32 %v41, %v44
    %vm46 = vweird.f32 %v41
    %v47 = vsel %vm46, %v41, %v45
    %v48 = vmul.f32 %v37, %v47
    %v49 = vmul.f32 %v40, %v47
    %v50 = vsub.f32 %v31, %v48
    %v51 = vsub.f32 %v32, %v49
    %v52 = vmul.f32 %v50, %v50
    %v53 = vmul.f32 %v51, %v51
    %v54 = vsel %vm34, %v52, 0.0
    %55 = vadd.xlane.f32.xlu0 %v54
    %v56 = vpop.xlane.xlu0 %55
    %v57 = vsel %vm34, %v53, 0.0
    %58 = vadd.xlane.f32.xlu0 %v57
    %v59 = vpop.xlane.xlu0 %58
    %v60 = vmul.f32 %v56, %v47
    %v61 = vmul.f32 %v59, %v47
    %v62 = vadd.f32 %v60, 1e-05
    %v63 = vadd.f32 %v61, 1e-05
    %v64 = vrsqrt.pop %v62
    %v65 = vmul.f32 %v64, %v62
    %v66 = vmul.f32 %v65, %v64
    %v67 = vmul.f32 0.5, %v66
    %v68 = vsub.f32 1.5, %v67
    %v69 = vmul.f32 %v64, %v68
    %vm70 = vweird.f32 %v62
    %vm71 = vweird.f32 %v64
    %vm72 = vmor %vm70, %vm71
    %v73 = vsel %vm72, %v64, %v69
    %v74 = vrsqrt.pop %v63
    %v75 = vmul.f32 %v74, %v63
    %v76 = vmul.f32 %v75, %v74
    %v77 = vmul.f32 0.5, %v76
    %v78 = vsub.f32 1.5, %v77
    %v79 = vmul.f32 %v74, %v78
    %vm80 = vweird.f32 %v63
    %vm81 = vweird.f32 %v74
    %vm82 = vmor %vm80, %vm81
    %v83 = vsel %vm82, %v74, %v79
    %v84 = vmul.f32 %v50, %v73
    %v85 = vmul.f32 %v51, %v83
    %v86 = vperm.slane %v33, 0
    %v87 = vmul.f32 %v84, %v86
    %v88 = vmul.f32 %v85, %v86
    %v89 = vperm.slane %v33, 1
    %v90 = vadd.f32 %v87, %v89
    %v91 = vadd.f32 %v88, %v89
    %v92 = vpack.c.bf16 %v91, %v90
    %v93 = vld [vmem:[%s4] sm:$0xf]
    %v94 = vld [vmem:[%s4 + $0x4] sm:$0xf]
    %v95 = vld [vmem:[%s4 + $0x8] sm:$0xf]
    %v96 = vld [vmem:[%s4 + $0xc] sm:$0xf]
    %v97 = vld [vmem:[%s2] sm:$0x1]
    %v99 = vperm.slane %v97, 0
    %v105 = vunpack.c.l.b16 %v93
    %v106 = vunpack.c.l.b16 %v94
    %v107 = vunpack.c.l.b16 %v95
    %v108 = vunpack.c.l.b16 %v96
    %v109 = vpack.c.b16 %v106, %v105
    %v110 = vpack.c.b16 %v108, %v107
    %v114 = vsel %vm34, %v92, 0
    %116 = vmatpush.bf16.msra.mxu0 0
    %117 = vmatpush.bf16.msra.mxu0 0
    %118 = vmatpush.bf16.msra.mxu0 0
    %119 = vmatpush.bf16.msra.mxu0 0
    %120 = vmatpush.bf16.msra.mxu0 0
    %121 = vmatpush.bf16.msra.mxu0 0
    %122 = vmatpush.bf16.msra.mxu0 %v110
    %123 = vmatpush.bf16.msra.mxu0 %v109
    %124 = vmatmul.bf16.gmra.mxu0 %v114
    %v125 = vpop.f32.mrf.mxu0
    %v126 = vadd.f32 %v99, %v125
    %v127 = vpop.f32.mrf.mxu0
    %v128 = vadd.f32 %v99, %v127
    %129 = vdwg.mxu0
    %v130 = vpack.c.bf16 %v126, %v126
    %v131 = vpack.c.bf16 %v128, %v128
    %v132 = vlaneseq
    %v133 = vshrl.u32 %v132, 7
    %v134 = vadd.s32 %v133, 8
    %v135 = vlaneseq
    %v136 = vand.u32 %v135, 127
    %vm137 = vcmp.lt.s32.totalorder %v133, 0
    %v138 = vsub.s32 0, %v133
    %v139 = vsel %vm137, %v138, %v133
    %v140 = vshrl.u32 %v139, 1
    %v141 = vand.u32 %v139, 1
    %v142 = vsub.s32 0, %v141
    %v143 = vsel %vm137, %v142, %v141
    %vm144 = vcmp.lt.s32.totalorder %v134, 0
    %v145 = vsub.s32 0, %v134
    %v146 = vsel %vm144, %v145, %v134
    %v147 = vshrl.u32 %v146, 1
    %v148 = vand.u32 %v146, 1
    %v149 = vsub.s32 0, %v148
    %v150 = vsel %vm144, %v149, %v148
    %vm151 = vcmp.ne.s32.totalorder %v143, 0
    %vm152 = vcmp.ne.s32.totalorder %v150, 0
    %vm153 = vcmp.lt.s32.totalorder %v143, 0
    %vm154 = vcmp.lt.s32.totalorder %v150, 0
    %vm155 = vmand %vm153, %vm151
    %vm156 = vmand %vm154, %vm152
    %v157 = vadd.s32 %v143, 2
    %v158 = vadd.s32 %v150, 2
    %v159 = vsel %vm155, %v157, %v143
    %v160 = vsel %vm156, %v158, %v150
    %vm161 = vcmp.lt.s32.totalorder %v136, 0
    %v162 = vsub.s32 0, %v136
    %v163 = vsel %vm161, %v162, %v136
    %v164 = vshrl.u32 %v163, 1
    %v165 = vand.u32 %v163, 1
    %v166 = vsub.s32 0, %v165
    %v167 = vsel %vm161, %v166, %v165
    %vm168 = vcmp.ne.s32.totalorder %v167, 0
    %vm169 = vcmp.lt.s32.totalorder %v167, 0
    %vm170 = vmand %vm169, %vm168
    %v171 = vadd.s32 %v167, 2
    %v172 = vsel %vm170, %v171, %v167
    %vm173 = vcmp.eq.s32.totalorder %v159, %v172
    %vm174 = vcmp.eq.s32.totalorder %v160, %v172
    %v175 = vsel %vm173, 0.0, -1e+30
    %v176 = vsel %vm174, 0.0, -1e+30
    %v179 = vunpack.c.l.b16 %v130
    %v180 = vunpack.c.l.b16 %v131
    %v181 = vpack.c.b16 %v180, %v179
    %182 = vrot.lane.b32.xlu0 %v181, 96
    %v183 = vpop.permute.xlu0 %182
    %vm184 = vcmask 64512
    %v186 = vsel %vm184, %v181, 0
    %v189 = vsel %vm184, %v183, 0
    %191 = vmatpush.bf16.xpose.msra.mxu0 0
    %192 = vmatpush.bf16.xpose.msra.mxu0 0
    %193 = vmatpush.bf16.xpose.msra.mxu0 0
    %194 = vmatpush.bf16.xpose.msra.mxu0 0
    %195 = vmatpush.bf16.xpose.msra.mxu0 0
    %196 = vmatpush.bf16.xpose.msra.mxu0 0
    %197 = vmatpush.bf16.xpose.msra.mxu0 0
    %198 = vmatpush.bf16.xpose.msra.mxu0 %v189
    %199 = vmatmul.bf16.gmra.mxu0 %v186
    %v200 = vpop.f32.mrf.mxu0
    %v201 = vadd.f32 0.0, %v200
    %v202 = vpop.f32.mrf.mxu0
    %v203 = vadd.f32 0.0, %v202
    %204 = vdwg.mxu0
    %v205 = vmul.f32 %v201, 0.35355338
    %v206 = vmul.f32 %v203, 0.35355338
    %v207 = vadd.f32 %v205, %v175
    %v208 = vadd.f32 %v206, %v176
    %vm209 = vcmask 130048
    %v210 = vsel %vm209, %v207, -inf
    %211 = vmax.xlane.f32.xlu0 %v210
    %v212 = vpop.xlane.xlu0 %211
    %v213 = vsel %vm209, %v208, -inf
    %214 = vmax.xlane.f32.xlu0 %v213
    %v215 = vpop.xlane.xlu0 %214
    %v216 = vsub.f32 %v207, %v212
    %v217 = vsub.f32 %v208, %v215
    %v218 = vmul.f32 %v216, 1.442695
    %v219 = vpow.pop %v218
    %v220 = vmul.f32 %v217, 1.442695
    %v221 = vpow.pop %v220
    %v222 = vsel %vm209, %v219, 0.0
    %223 = vadd.xlane.f32.xlu0 %v222
    %v224 = vpop.xlane.xlu0 %223
    %v225 = vsel %vm209, %v221, 0.0
    %226 = vadd.xlane.f32.xlu0 %v225
    %v227 = vpop.xlane.xlu0 %226
    %v228 = vrcp.pop %v224
    %v229 = vrcp.pop %v227
    %v230 = vmul.f32 %v219, %v228
    %v231 = vmul.f32 %v221, %v229
    %v232 = vpack.c.bf16 %v231, %v230
    %233 = vrot.lane.b32.xlu0 %v181, 64
    %v234 = vpop.permute.xlu0 %233
    %v237 = vsel %vm209, %v232, 0
    %239 = vmatpush.bf16.msra.mxu0 0
    %240 = vmatpush.bf16.msra.mxu0 0
    %241 = vmatpush.bf16.msra.mxu0 0
    %242 = vmatpush.bf16.msra.mxu0 0
    %243 = vmatpush.bf16.msra.mxu0 0
    %244 = vmatpush.bf16.msra.mxu0 0
    %245 = vmatpush.bf16.msra.mxu0 0
    %246 = vmatpush.bf16.msra.mxu0 %v234
    %247 = vmatmul.bf16.gmra.mxu0 %v237
    %v248 = vpop.f32.mrf.mxu0
    %v249 = vadd.f32 0.0, %v248
    %v250 = vpop.f32.mrf.mxu0
    %v251 = vadd.f32 0.0, %v250
    %252 = vdwg.mxu0
    %253 = vst.msk [vmem:[#allocation2] sm:$0xff] %vm184, %v249
    %254 = vst.msk [vmem:[#allocation2 + $0x8] sm:$0xff] %vm184, %v251
    %255 = vrot.lane.b32.xlu0 %v181, 120
    %v256 = vpop.permute.xlu0 %255
    %257 = vrot.lane.b32.xlu0 %v181, 88
    %v258 = vpop.permute.xlu0 %257
    %v260 = vsel %vm184, %v256, 0
    %v263 = vsel %vm184, %v258, 0
    %265 = vmatpush.bf16.xpose.msra.mxu0 0
    %266 = vmatpush.bf16.xpose.msra.mxu0 0
    %267 = vmatpush.bf16.xpose.msra.mxu0 0
    %268 = vmatpush.bf16.xpose.msra.mxu0 0
    %269 = vmatpush.bf16.xpose.msra.mxu0 0
    %270 = vmatpush.bf16.xpose.msra.mxu0 0
    %271 = vmatpush.bf16.xpose.msra.mxu0 0
    %272 = vmatpush.bf16.xpose.msra.mxu0 %v263
    %273 = vmatmul.bf16.gmra.mxu0 %v260
    %v274 = vpop.f32.mrf.mxu0
    %v275 = vadd.f32 0.0, %v274
    %v276 = vpop.f32.mrf.mxu0
    %v277 = vadd.f32 0.0, %v276
    %278 = vdwg.mxu0
    %v279 = vmul.f32 %v275, 0.35355338
    %v280 = vmul.f32 %v277, 0.35355338
    %v281 = vadd.f32 %v279, %v175
    %v282 = vadd.f32 %v280, %v176
    %v283 = vsel %vm209, %v281, -inf
    %284 = vmax.xlane.f32.xlu0 %v283
    %v285 = vpop.xlane.xlu0 %284
    %v286 = vsel %vm209, %v282, -inf
    %287 = vmax.xlane.f32.xlu0 %v286
    %v288 = vpop.xlane.xlu0 %287
    %v289 = vsub.f32 %v281, %v285
    %v290 = vsub.f32 %v282, %v288
    %v291 = vmul.f32 %v289, 1.442695
    %v292 = vpow.pop %v291
    %v293 = vmul.f32 %v290, 1.442695
    %v294 = vpow.pop %v293
    %v295 = vsel %vm209, %v292, 0.0
    %296 = vadd.xlane.f32.xlu0 %v295
    %v297 = vpop.xlane.xlu0 %296
    %v298 = vsel %vm209, %v294, 0.0
    %299 = vadd.xlane.f32.xlu0 %v298
    %v300 = vpop.xlane.xlu0 %299
    %v301 = vrcp.pop %v297
    %v302 = vrcp.pop %v300
    %v303 = vmul.f32 %v292, %v301
    %v304 = vmul.f32 %v294, %v302
    %v305 = vpack.c.bf16 %v304, %v303
    %306 = vrot.lane.b32.xlu0 %v181, 56
    %v307 = vpop.permute.xlu0 %306
    %v310 = vsel %vm209, %v305, 0
    %312 = vmatpush.bf16.msra.mxu0 0
    %313 = vmatpush.bf16.msra.mxu0 0
    %314 = vmatpush.bf16.msra.mxu0 0
    %315 = vmatpush.bf16.msra.mxu0 0
    %316 = vmatpush.bf16.msra.mxu0 0
    %317 = vmatpush.bf16.msra.mxu0 0
    %318 = vmatpush.bf16.msra.mxu0 0
    %319 = vmatpush.bf16.msra.mxu0 %v307
    %320 = vmatmul.bf16.gmra.mxu0 %v310
    %v321 = vpop.f32.mrf.mxu0
    %v322 = vadd.f32 0.0, %v321
    %v323 = vpop.f32.mrf.mxu0
    %v324 = vadd.f32 0.0, %v323
    %325 = vdwg.mxu0
    %328 = vrot.lane.b32.xlu0 %v322, 8
    %v329 = vpop.permute.xlu0 %328
    %330 = vrot.lane.b32.xlu0 %v324, 8
    %v331 = vpop.permute.xlu0 %330
    %vm334 = vcmask 130112
    %335 = vst.msk [vmem:[#allocation2] sm:$0xff] %vm334, %v329
    %336 = vst.msk [vmem:[#allocation2 + $0x8] sm:$0xff] %vm334, %v331
    %337 = vrot.lane.b32.xlu0 %v181, 112
    %v338 = vpop.permute.xlu0 %337
    %339 = vrot.lane.b32.xlu0 %v181, 80
    %v340 = vpop.permute.xlu0 %339
    %v342 = vsel %vm184, %v338, 0
    %v345 = vsel %vm184, %v340, 0
    %347 = vmatpush.bf16.xpose.msra.mxu0 0
    %348 = vmatpush.bf16.xpose.msra.mxu0 0
    %349 = vmatpush.bf16.xpose.msra.mxu0 0
    %350 = vmatpush.bf16.xpose.msra.mxu0 0
    %351 = vmatpush.bf16.xpose.msra.mxu0 0
    %352 = vmatpush.bf16.xpose.msra.mxu0 0
    %353 = vmatpush.bf16.xpose.msra.mxu0 0
    %354 = vmatpush.bf16.xpose.msra.mxu0 %v345
    %355 = vmatmul.bf16.gmra.mxu0 %v342
    %v356 = vpop.f32.mrf.mxu0
    %v357 = vadd.f32 0.0, %v356
    %v358 = vpop.f32.mrf.mxu0
    %v359 = vadd.f32 0.0, %v358
    %360 = vdwg.mxu0
    %v361 = vmul.f32 %v357, 0.35355338
    %v362 = vmul.f32 %v359, 0.35355338
    %v363 = vadd.f32 %v361, %v175
    %v364 = vadd.f32 %v362, %v176
    %v365 = vsel %vm209, %v363, -inf
    %366 = vmax.xlane.f32.xlu0 %v365
    %v367 = vpop.xlane.xlu0 %366
    %v368 = vsel %vm209, %v364, -inf
    %369 = vmax.xlane.f32.xlu0 %v368
    %v370 = vpop.xlane.xlu0 %369
    %v371 = vsub.f32 %v363, %v367
    %v372 = vsub.f32 %v364, %v370
    %v373 = vmul.f32 %v371, 1.442695
    %v374 = vpow.pop %v373
    %v375 = vmul.f32 %v372, 1.442695
    %v376 = vpow.pop %v375
    %v377 = vsel %vm209, %v374, 0.0
    %378 = vadd.xlane.f32.xlu0 %v377
    %v379 = vpop.xlane.xlu0 %378
    %v380 = vsel %vm209, %v376, 0.0
    %381 = vadd.xlane.f32.xlu0 %v380
    %v382 = vpop.xlane.xlu0 %381
    %v383 = vrcp.pop %v379
    %v384 = vrcp.pop %v382
    %v385 = vmul.f32 %v374, %v383
    %v386 = vmul.f32 %v376, %v384
    %v387 = vpack.c.bf16 %v386, %v385
    %388 = vrot.lane.b32.xlu0 %v181, 48
    %v389 = vpop.permute.xlu0 %388
    %v392 = vsel %vm209, %v387, 0
    %394 = vmatpush.bf16.msra.mxu0 0
    %395 = vmatpush.bf16.msra.mxu0 0
    %396 = vmatpush.bf16.msra.mxu0 0
    %397 = vmatpush.bf16.msra.mxu0 0
    %398 = vmatpush.bf16.msra.mxu0 0
    %399 = vmatpush.bf16.msra.mxu0 0
    %400 = vmatpush.bf16.msra.mxu0 0
    %401 = vmatpush.bf16.msra.mxu0 %v389
    %402 = vmatmul.bf16.gmra.mxu0 %v392
    %v403 = vpop.f32.mrf.mxu0
    %v404 = vadd.f32 0.0, %v403
    %v405 = vpop.f32.mrf.mxu0
    %v406 = vadd.f32 0.0, %v405
    %407 = vdwg.mxu0
    %410 = vrot.lane.b32.xlu0 %v404, 16
    %v411 = vpop.permute.xlu0 %410
    %412 = vrot.lane.b32.xlu0 %v406, 16
    %v413 = vpop.permute.xlu0 %412
    %vm416 = vcmask 195712
    %417 = vst.msk [vmem:[#allocation2] sm:$0xff] %vm416, %v411
    %418 = vst.msk [vmem:[#allocation2 + $0x8] sm:$0xff] %vm416, %v413
    %419 = vrot.lane.b32.xlu0 %v181, 104
    %v420 = vpop.permute.xlu0 %419
    %421 = vrot.lane.b32.xlu0 %v181, 72
    %v422 = vpop.permute.xlu0 %421
    %v424 = vsel %vm184, %v420, 0
    %v427 = vsel %vm184, %v422, 0
    %429 = vmatpush.bf16.xpose.msra.mxu0 0
    %430 = vmatpush.bf16.xpose.msra.mxu0 0
    %431 = vmatpush.bf16.xpose.msra.mxu0 0
    %432 = vmatpush.bf16.xpose.msra.mxu0 0
    %433 = vmatpush.bf16.xpose.msra.mxu0 0
    %434 = vmatpush.bf16.xpose.msra.mxu0 0
    %435 = vmatpush.bf16.xpose.msra.mxu0 0
    %436 = vmatpush.bf16.xpose.msra.mxu0 %v427
    %437 = vmatmul.bf16.gmra.mxu0 %v424
    %v438 = vpop.f32.mrf.mxu0
    %v439 = vadd.f32 0.0, %v438
    %v440 = vpop.f32.mrf.mxu0
    %v441 = vadd.f32 0.0, %v440
    %442 = vdwg.mxu0
    %v443 = vmul.f32 %v439, 0.35355338
    %v444 = vmul.f32 %v441, 0.35355338
    %v445 = vadd.f32 %v443, %v175
    %v446 = vadd.f32 %v444, %v176
    %v447 = vsel %vm209, %v445, -inf
    %448 = vmax.xlane.f32.xlu0 %v447
    %v449 = vpop.xlane.xlu0 %448
    %v450 = vsel %vm209, %v446, -inf
    %451 = vmax.xlane.f32.xlu0 %v450
    %v452 = vpop.xlane.xlu0 %451
    %v453 = vsub.f32 %v445, %v449
    %v454 = vsub.f32 %v446, %v452
    %v455 = vmul.f32 %v453, 1.442695
    %v456 = vpow.pop %v455
    %v457 = vmul.f32 %v454, 1.442695
    %v458 = vpow.pop %v457
    %v459 = vsel %vm209, %v456, 0.0
    %460 = vadd.xlane.f32.xlu0 %v459
    %v461 = vpop.xlane.xlu0 %460
    %v462 = vsel %vm209, %v458, 0.0
    %463 = vadd.xlane.f32.xlu0 %v462
    %v464 = vpop.xlane.xlu0 %463
    %v465 = vrcp.pop %v461
    %v466 = vrcp.pop %v464
    %v467 = vmul.f32 %v456, %v465
    %v468 = vmul.f32 %v458, %v466
    %v469 = vpack.c.bf16 %v468, %v467
    %470 = vrot.lane.b32.xlu0 %v181, 40
    %v471 = vpop.permute.xlu0 %470
    %v474 = vsel %vm209, %v469, 0
    %476 = vmatpush.bf16.msra.mxu0 0
    %477 = vmatpush.bf16.msra.mxu0 0
    %478 = vmatpush.bf16.msra.mxu0 0
    %479 = vmatpush.bf16.msra.mxu0 0
    %480 = vmatpush.bf16.msra.mxu0 0
    %481 = vmatpush.bf16.msra.mxu0 0
    %482 = vmatpush.bf16.msra.mxu0 0
    %483 = vmatpush.bf16.msra.mxu0 %v471
    %484 = vmatmul.bf16.gmra.mxu0 %v474
    %v485 = vpop.f32.mrf.mxu0
    %v486 = vadd.f32 0.0, %v485
    %v487 = vpop.f32.mrf.mxu0
    %v488 = vadd.f32 0.0, %v487
    %489 = vdwg.mxu0
    %492 = vrot.lane.b32.xlu0 %v486, 24
    %v493 = vpop.permute.xlu0 %492
    %494 = vrot.lane.b32.xlu0 %v488, 24
    %v495 = vpop.permute.xlu0 %494
    %vm498 = vcmask 261312
    %499 = vst.msk [vmem:[#allocation2] sm:$0xff] %vm498, %v493
    %500 = vst.msk [vmem:[#allocation2 + $0x8] sm:$0xff] %vm498, %v495
    %v501 = vld [vmem:[#allocation2] sm:$0xff]
    %v502 = vld [vmem:[#allocation2 + $0x8] sm:$0xff]
    %v503 = vpack.c.bf16 %v502, %v501
    %v504 = vld [vmem:[%s5] sm:$0xf]
    %v505 = vld [vmem:[%s5 + $0x4] sm:$0xf]
    %v506 = vld [vmem:[%s5 + $0x8] sm:$0xf]
    %v507 = vld [vmem:[%s5 + $0xc] sm:$0xf]
    %v508 = vperm.slane %v33, 6
    %v513 = vunpack.c.l.b16 %v504
    %v514 = vunpack.c.l.b16 %v505
    %v515 = vunpack.c.l.b16 %v506
    %v516 = vunpack.c.l.b16 %v507
    %v517 = vpack.c.b16 %v514, %v513
    %v518 = vpack.c.b16 %v516, %v515
    %v522 = vsel %vm34, %v503, 0
    %524 = vmatpush.bf16.msra.mxu0 0
    %525 = vmatpush.bf16.msra.mxu0 0
    %526 = vmatpush.bf16.msra.mxu0 0
    %527 = vmatpush.bf16.msra.mxu0 0
    %528 = vmatpush.bf16.msra.mxu0 0
    %529 = vmatpush.bf16.msra.mxu0 0
    %530 = vmatpush.bf16.msra.mxu0 %v518
    %531 = vmatpush.bf16.msra.mxu0 %v517
    %532 = vmatmul.bf16.gmra.mxu0 %v522
    %v533 = vpop.f32.mrf.mxu0
    %v534 = vadd.f32 %v508, %v533
    %v535 = vpop.f32.mrf.mxu0
    %v536 = vadd.f32 %v508, %v535
    %537 = vdwg.mxu0
    %v538 = vadd.f32 %v534, %v31
    %v539 = vadd.f32 %v536, %v32
    %v540 = vsel %vm34, %v538, 0.0
    %541 = vadd.xlane.f32.xlu0 %v540
    %v542 = vpop.xlane.xlu0 %541
    %v543 = vsel %vm34, %v539, 0.0
    %544 = vadd.xlane.f32.xlu0 %v543
    %v545 = vpop.xlane.xlu0 %544
    %v546 = vmul.f32 %v542, %v47
    %v547 = vmul.f32 %v545, %v47
    %v548 = vsub.f32 %v538, %v546
    %v549 = vsub.f32 %v539, %v547
    %v550 = vmul.f32 %v548, %v548
    %v551 = vmul.f32 %v549, %v549
    %v552 = vsel %vm34, %v550, 0.0
    %553 = vadd.xlane.f32.xlu0 %v552
    %v554 = vpop.xlane.xlu0 %553
    %v555 = vsel %vm34, %v551, 0.0
    %556 = vadd.xlane.f32.xlu0 %v555
    %v557 = vpop.xlane.xlu0 %556
    %v558 = vmul.f32 %v554, %v47
    %v559 = vmul.f32 %v557, %v47
    %v560 = vadd.f32 %v558, 1e-05
    %v561 = vadd.f32 %v559, 1e-05
    %v562 = vrsqrt.pop %v560
    %v563 = vmul.f32 %v562, %v560
    %v564 = vmul.f32 %v563, %v562
    %v565 = vmul.f32 0.5, %v564
    %v566 = vsub.f32 1.5, %v565
    %v567 = vmul.f32 %v562, %v566
    %vm568 = vweird.f32 %v560
    %vm569 = vweird.f32 %v562
    %vm570 = vmor %vm568, %vm569
    %v571 = vsel %vm570, %v562, %v567
    %v572 = vrsqrt.pop %v561
    %v573 = vmul.f32 %v572, %v561
    %v574 = vmul.f32 %v573, %v572
    %v575 = vmul.f32 0.5, %v574
    %v576 = vsub.f32 1.5, %v575
    %v577 = vmul.f32 %v572, %v576
    %vm578 = vweird.f32 %v561
    %vm579 = vweird.f32 %v572
    %vm580 = vmor %vm578, %vm579
    %v581 = vsel %vm580, %v572, %v577
    %v582 = vmul.f32 %v548, %v571
    %v583 = vmul.f32 %v549, %v581
    %v584 = vperm.slane %v33, 2
    %v585 = vmul.f32 %v582, %v584
    %v586 = vmul.f32 %v583, %v584
    %v587 = vperm.slane %v33, 3
    %v588 = vadd.f32 %v585, %v587
    %v589 = vadd.f32 %v586, %v587
    %v590 = vpack.c.bf16 %v589, %v588
    %v591 = vld [vmem:[%s6] sm:$0xff]
    %v592 = vld [vmem:[%s6 + $0x8] sm:$0xff]
    %v593 = vld [vmem:[%s6 + $0x10] sm:$0xff]
    %v594 = vld [vmem:[%s6 + $0x18] sm:$0xff]
    %v595 = vld [vmem:[%s6 + $0x20] sm:$0xff]
    %v596 = vld [vmem:[%s6 + $0x28] sm:$0xff]
    %v597 = vld [vmem:[%s6 + $0x30] sm:$0xff]
    %v598 = vld [vmem:[%s6 + $0x38] sm:$0xff]
    %v599 = vld [vmem:[%s6 + $0x40] sm:$0xff]
    %v600 = vld [vmem:[%s6 + $0x48] sm:$0xff]
    %v601 = vld [vmem:[%s6 + $0x50] sm:$0xff]
    %v602 = vld [vmem:[%s6 + $0x58] sm:$0xff]
    %v603 = vld [vmem:[%s6 + $0x60] sm:$0xff]
    %v604 = vld [vmem:[%s6 + $0x68] sm:$0xff]
    %v605 = vld [vmem:[%s6 + $0x70] sm:$0xff]
    %v606 = vld [vmem:[%s6 + $0x78] sm:$0xff]
    %v607 = vld [vmem:[%s6 + $0x80] sm:$0xff]
    %v608 = vld [vmem:[%s6 + $0x88] sm:$0xff]
    %v609 = vld [vmem:[%s6 + $0x90] sm:$0xff]
    %v610 = vld [vmem:[%s6 + $0x98] sm:$0xff]
    %v611 = vld [vmem:[%s6 + $0xa0] sm:$0xff]
    %v612 = vld [vmem:[%s6 + $0xa8] sm:$0xff]
    %v613 = vld [vmem:[%s6 + $0xb0] sm:$0xff]
    %v614 = vld [vmem:[%s6 + $0xb8] sm:$0xff]
    %v615 = vld [vmem:[%s6 + $0xc0] sm:$0xff]
    %v616 = vld [vmem:[%s6 + $0xc8] sm:$0xff]
    %v617 = vld [vmem:[%s6 + $0xd0] sm:$0xff]
    %v618 = vld [vmem:[%s6 + $0xd8] sm:$0xff]
    %v619 = vld [vmem:[%s6 + $0xe0] sm:$0xff]
    %v620 = vld [vmem:[%s6 + $0xe8] sm:$0xff]
    %v621 = vld [vmem:[%s6 + $0xf0] sm:$0xff]
    %v622 = vld [vmem:[%s6 + $0xf8] sm:$0xff]
    %v623 = vld [vmem:[%s3] sm:$0xff]
    %v624 = vld [vmem:[%s3 + $0x8] sm:$0xff]
    %v627 = vperm.slane %v623, 0
    %v628 = vperm.slane %v623, 1
    %v629 = vperm.slane %v623, 2
    %v630 = vperm.slane %v623, 3
    %v631 = vperm.slane %v623, 4
    %v632 = vperm.slane %v623, 5
    %v633 = vperm.slane %v623, 6
    %v634 = vperm.slane %v623, 7
    %v635 = vperm.slane %v624, 0
    %v636 = vperm.slane %v624, 1
    %v637 = vperm.slane %v624, 2
    %v638 = vperm.slane %v624, 3
    %v639 = vperm.slane %v624, 4
    %v640 = vperm.slane %v624, 5
    %v641 = vperm.slane %v624, 6
    %v642 = vperm.slane %v624, 7
    %v691 = vunpack.c.l.b16 %v591
    %v692 = vunpack.c.h.b16 %v591
    %v693 = vunpack.c.l.b16 %v592
    %v694 = vunpack.c.h.b16 %v592
    %v695 = vunpack.c.l.b16 %v593
    %v696 = vunpack.c.h.b16 %v593
    %v697 = vunpack.c.l.b16 %v594
    %v698 = vunpack.c.h.b16 %v594
    %v699 = vunpack.c.l.b16 %v595
    %v700 = vunpack.c.h.b16 %v595
    %v701 = vunpack.c.l.b16 %v596
    %v702 = vunpack.c.h.b16 %v596
    %v703 = vunpack.c.l.b16 %v597
    %v704 = vunpack.c.h.b16 %v597
    %v705 = vunpack.c.l.b16 %v598
    %v706 = vunpack.c.h.b16 %v598
    %v707 = vunpack.c.l.b16 %v599
    %v708 = vunpack.c.h.b16 %v599
    %v709 = vunpack.c.l.b16 %v600
    %v710 = vunpack.c.h.b16 %v600
    %v711 = vunpack.c.l.b16 %v601
    %v712 = vunpack.c.h.b16 %v601
    %v713 = vunpack.c.l.b16 %v602
    %v714 = vunpack.c.h.b16 %v602
    %v715 = vunpack.c.l.b16 %v603
    %v716 = vunpack.c.h.b16 %v603
    %v717 = vunpack.c.l.b16 %v604
    %v718 = vunpack.c.h.b16 %v604
    %v719 = vunpack.c.l.b16 %v605
    %v720 = vunpack.c.h.b16 %v605
    %v721 = vunpack.c.l.b16 %v606
    %v722 = vunpack.c.h.b16 %v606
    %v723 = vunpack.c.l.b16 %v607
    %v724 = vunpack.c.h.b16 %v607
    %v725 = vunpack.c.l.b16 %v608
    %v726 = vunpack.c.h.b16 %v608
    %v727 = vunpack.c.l.b16 %v609
    %v728 = vunpack.c.h.b16 %v609
    %v729 = vunpack.c.l.b16 %v610
    %v730 = vunpack.c.h.b16 %v610
    %v731 = vunpack.c.l.b16 %v611
    %v732 = vunpack.c.h.b16 %v611
    %v733 = vunpack.c.l.b16 %v612
    %v734 = vunpack.c.h.b16 %v612
    %v735 = vunpack.c.l.b16 %v613
    %v736 = vunpack.c.h.b16 %v613
    %v737 = vunpack.c.l.b16 %v614
    %v738 = vunpack.c.h.b16 %v614
    %v739 = vunpack.c.l.b16 %v615
    %v740 = vunpack.c.h.b16 %v615
    %v741 = vunpack.c.l.b16 %v616
    %v742 = vunpack.c.h.b16 %v616
    %v743 = vunpack.c.l.b16 %v617
    %v744 = vunpack.c.h.b16 %v617
    %v745 = vunpack.c.l.b16 %v618
    %v746 = vunpack.c.h.b16 %v618
    %v747 = vunpack.c.l.b16 %v619
    %v748 = vunpack.c.h.b16 %v619
    %v749 = vunpack.c.l.b16 %v620
    %v750 = vunpack.c.h.b16 %v620
    %v751 = vunpack.c.l.b16 %v621
    %v752 = vunpack.c.h.b16 %v621
    %v753 = vunpack.c.l.b16 %v622
    %v754 = vunpack.c.h.b16 %v622
    %v755 = vpack.c.b16 %v707, %v691
    %v756 = vpack.c.b16 %v708, %v692
    %v757 = vpack.c.b16 %v709, %v693
    %v758 = vpack.c.b16 %v710, %v694
    %v759 = vpack.c.b16 %v711, %v695
    %v760 = vpack.c.b16 %v712, %v696
    %v761 = vpack.c.b16 %v713, %v697
    %v762 = vpack.c.b16 %v714, %v698
    %v763 = vpack.c.b16 %v715, %v699
    %v764 = vpack.c.b16 %v716, %v700
    %v765 = vpack.c.b16 %v717, %v701
    %v766 = vpack.c.b16 %v718, %v702
    %v767 = vpack.c.b16 %v719, %v703
    %v768 = vpack.c.b16 %v720, %v704
    %v769 = vpack.c.b16 %v721, %v705
    %v770 = vpack.c.b16 %v722, %v706
    %v771 = vpack.c.b16 %v739, %v723
    %v772 = vpack.c.b16 %v740, %v724
    %v773 = vpack.c.b16 %v741, %v725
    %v774 = vpack.c.b16 %v742, %v726
    %v775 = vpack.c.b16 %v743, %v727
    %v776 = vpack.c.b16 %v744, %v728
    %v777 = vpack.c.b16 %v745, %v729
    %v778 = vpack.c.b16 %v746, %v730
    %v779 = vpack.c.b16 %v747, %v731
    %v780 = vpack.c.b16 %v748, %v732
    %v781 = vpack.c.b16 %v749, %v733
    %v782 = vpack.c.b16 %v750, %v734
    %v783 = vpack.c.b16 %v751, %v735
    %v784 = vpack.c.b16 %v752, %v736
    %v785 = vpack.c.b16 %v753, %v737
    %v786 = vpack.c.b16 %v754, %v738
    %v820 = vsel %vm34, %v590, 0
    %822 = vmatpush.bf16.msra.mxu0 0
    %823 = vmatpush.bf16.msra.mxu0 0
    %824 = vmatpush.bf16.msra.mxu0 0
    %825 = vmatpush.bf16.msra.mxu0 0
    %826 = vmatpush.bf16.msra.mxu0 0
    %827 = vmatpush.bf16.msra.mxu0 0
    %828 = vmatpush.bf16.msra.mxu0 %v771
    %829 = vmatpush.bf16.msra.mxu0 %v755
    %830 = vmatmul.bf16.gmra.mxu0 %v820
    %v831 = vpop.f32.mrf.mxu0
    %v832 = vadd.f32 %v627, %v831
    %v833 = vpop.f32.mrf.mxu0
    %v834 = vadd.f32 %v627, %v833
    %835 = vdwg.mxu0
    %836 = vmatpush.bf16.msra.mxu0 0
    %837 = vmatpush.bf16.msra.mxu0 0
    %838 = vmatpush.bf16.msra.mxu0 0
    %839 = vmatpush.bf16.msra.mxu0 0
    %840 = vmatpush.bf16.msra.mxu0 0
    %841 = vmatpush.bf16.msra.mxu0 0
    %842 = vmatpush.bf16.msra.mxu0 %v772
    %843 = vmatpush.bf16.msra.mxu0 %v756
    %844 = vmatmul.bf16.gmra.mxu0 %v820
    %v845 = vpop.f32.mrf.mxu0
    %v846 = vadd.f32 %v628, %v845
    %v847 = vpop.f32.mrf.mxu0
    %v848 = vadd.f32 %v628, %v847
    %849 = vdwg.mxu0
    %850 = vmatpush.bf16.msra.mxu0 0
    %851 = vmatpush.bf16.msra.mxu0 0
    %852 = vmatpush.bf16.msra.mxu0 0
    %853 = vmatpush.bf16.msra.mxu0 0
    %854 = vmatpush.bf16.msra.mxu0 0
    %855 = vmatpush.bf16.msra.mxu0 0
    %856 = vmatpush.bf16.msra.mxu0 %v773
    %857 = vmatpush.bf16.msra.mxu0 %v757
    %858 = vmatmul.bf16.gmra.mxu0 %v820
    %v859 = vpop.f32.mrf.mxu0
    %v860 = vadd.f32 %v629, %v859
    %v861 = vpop.f32.mrf.mxu0
    %v862 = vadd.f32 %v629, %v861
    %863 = vdwg.mxu0
    %864 = vmatpush.bf16.msra.mxu0 0
    %865 = vmatpush.bf16.msra.mxu0 0
    %866 = vmatpush.bf16.msra.mxu0 0
    %867 = vmatpush.bf16.msra.mxu0 0
    %868 = vmatpush.bf16.msra.mxu0 0
    %869 = vmatpush.bf16.msra.mxu0 0
    %870 = vmatpush.bf16.msra.mxu0 %v774
    %871 = vmatpush.bf16.msra.mxu0 %v758
    %872 = vmatmul.bf16.gmra.mxu0 %v820
    %v873 = vpop.f32.mrf.mxu0
    %v874 = vadd.f32 %v630, %v873
    %v875 = vpop.f32.mrf.mxu0
    %v876 = vadd.f32 %v630, %v875
    %877 = vdwg.mxu0
    %878 = vmatpush.bf16.msra.mxu0 0
    %879 = vmatpush.bf16.msra.mxu0 0
    %880 = vmatpush.bf16.msra.mxu0 0
    %881 = vmatpush.bf16.msra.mxu0 0
    %882 = vmatpush.bf16.msra.mxu0 0
    %883 = vmatpush.bf16.msra.mxu0 0
    %884 = vmatpush.bf16.msra.mxu0 %v775
    %885 = vmatpush.bf16.msra.mxu0 %v759
    %886 = vmatmul.bf16.gmra.mxu0 %v820
    %v887 = vpop.f32.mrf.mxu0
    %v888 = vadd.f32 %v631, %v887
    %v889 = vpop.f32.mrf.mxu0
    %v890 = vadd.f32 %v631, %v889
    %891 = vdwg.mxu0
    %892 = vmatpush.bf16.msra.mxu0 0
    %893 = vmatpush.bf16.msra.mxu0 0
    %894 = vmatpush.bf16.msra.mxu0 0
    %895 = vmatpush.bf16.msra.mxu0 0
    %896 = vmatpush.bf16.msra.mxu0 0
    %897 = vmatpush.bf16.msra.mxu0 0
    %898 = vmatpush.bf16.msra.mxu0 %v776
    %899 = vmatpush.bf16.msra.mxu0 %v760
    %900 = vmatmul.bf16.gmra.mxu0 %v820
    %v901 = vpop.f32.mrf.mxu0
    %v902 = vadd.f32 %v632, %v901
    %v903 = vpop.f32.mrf.mxu0
    %v904 = vadd.f32 %v632, %v903
    %905 = vdwg.mxu0
    %906 = vmatpush.bf16.msra.mxu0 0
    %907 = vmatpush.bf16.msra.mxu0 0
    %908 = vmatpush.bf16.msra.mxu0 0
    %909 = vmatpush.bf16.msra.mxu0 0
    %910 = vmatpush.bf16.msra.mxu0 0
    %911 = vmatpush.bf16.msra.mxu0 0
    %912 = vmatpush.bf16.msra.mxu0 %v777
    %913 = vmatpush.bf16.msra.mxu0 %v761
    %914 = vmatmul.bf16.gmra.mxu0 %v820
    %v915 = vpop.f32.mrf.mxu0
    %v916 = vadd.f32 %v633, %v915
    %v917 = vpop.f32.mrf.mxu0
    %v918 = vadd.f32 %v633, %v917
    %919 = vdwg.mxu0
    %920 = vmatpush.bf16.msra.mxu0 0
    %921 = vmatpush.bf16.msra.mxu0 0
    %922 = vmatpush.bf16.msra.mxu0 0
    %923 = vmatpush.bf16.msra.mxu0 0
    %924 = vmatpush.bf16.msra.mxu0 0
    %925 = vmatpush.bf16.msra.mxu0 0
    %926 = vmatpush.bf16.msra.mxu0 %v778
    %927 = vmatpush.bf16.msra.mxu0 %v762
    %928 = vmatmul.bf16.gmra.mxu0 %v820
    %v929 = vpop.f32.mrf.mxu0
    %v930 = vadd.f32 %v634, %v929
    %v931 = vpop.f32.mrf.mxu0
    %v932 = vadd.f32 %v634, %v931
    %933 = vdwg.mxu0
    %934 = vmatpush.bf16.msra.mxu0 0
    %935 = vmatpush.bf16.msra.mxu0 0
    %936 = vmatpush.bf16.msra.mxu0 0
    %937 = vmatpush.bf16.msra.mxu0 0
    %938 = vmatpush.bf16.msra.mxu0 0
    %939 = vmatpush.bf16.msra.mxu0 0
    %940 = vmatpush.bf16.msra.mxu0 %v779
    %941 = vmatpush.bf16.msra.mxu0 %v763
    %942 = vmatmul.bf16.gmra.mxu0 %v820
    %v943 = vpop.f32.mrf.mxu0
    %v944 = vadd.f32 %v635, %v943
    %v945 = vpop.f32.mrf.mxu0
    %v946 = vadd.f32 %v635, %v945
    %947 = vdwg.mxu0
    %948 = vmatpush.bf16.msra.mxu0 0
    %949 = vmatpush.bf16.msra.mxu0 0
    %950 = vmatpush.bf16.msra.mxu0 0
    %951 = vmatpush.bf16.msra.mxu0 0
    %952 = vmatpush.bf16.msra.mxu0 0
    %953 = vmatpush.bf16.msra.mxu0 0
    %954 = vmatpush.bf16.msra.mxu0 %v780
    %955 = vmatpush.bf16.msra.mxu0 %v764
    %956 = vmatmul.bf16.gmra.mxu0 %v820
    %v957 = vpop.f32.mrf.mxu0
    %v958 = vadd.f32 %v636, %v957
    %v959 = vpop.f32.mrf.mxu0
    %v960 = vadd.f32 %v636, %v959
    %961 = vdwg.mxu0
    %962 = vmatpush.bf16.msra.mxu0 0
    %963 = vmatpush.bf16.msra.mxu0 0
    %964 = vmatpush.bf16.msra.mxu0 0
    %965 = vmatpush.bf16.msra.mxu0 0
    %966 = vmatpush.bf16.msra.mxu0 0
    %967 = vmatpush.bf16.msra.mxu0 0
    %968 = vmatpush.bf16.msra.mxu0 %v781
    %969 = vmatpush.bf16.msra.mxu0 %v765
    %970 = vmatmul.bf16.gmra.mxu0 %v820
    %v971 = vpop.f32.mrf.mxu0
    %v972 = vadd.f32 %v637, %v971
    %v973 = vpop.f32.mrf.mxu0
    %v974 = vadd.f32 %v637, %v973
    %975 = vdwg.mxu0
    %976 = vmatpush.bf16.msra.mxu0 0
    %977 = vmatpush.bf16.msra.mxu0 0
    %978 = vmatpush.bf16.msra.mxu0 0
    %979 = vmatpush.bf16.msra.mxu0 0
    %980 = vmatpush.bf16.msra.mxu0 0
    %981 = vmatpush.bf16.msra.mxu0 0
    %982 = vmatpush.bf16.msra.mxu0 %v782
    %983 = vmatpush.bf16.msra.mxu0 %v766
    %984 = vmatmul.bf16.gmra.mxu0 %v820
    %v985 = vpop.f32.mrf.mxu0
    %v986 = vadd.f32 %v638, %v985
    %v987 = vpop.f32.mrf.mxu0
    %v988 = vadd.f32 %v638, %v987
    %989 = vdwg.mxu0
    %990 = vmatpush.bf16.msra.mxu0 0
    %991 = vmatpush.bf16.msra.mxu0 0
    %992 = vmatpush.bf16.msra.mxu0 0
    %993 = vmatpush.bf16.msra.mxu0 0
    %994 = vmatpush.bf16.msra.mxu0 0
    %995 = vmatpush.bf16.msra.mxu0 0
    %996 = vmatpush.bf16.msra.mxu0 %v783
    %997 = vmatpush.bf16.msra.mxu0 %v767
    %998 = vmatmul.bf16.gmra.mxu0 %v820
    %v999 = vpop.f32.mrf.mxu0
    %v1000 = vadd.f32 %v639, %v999
    %v1001 = vpop.f32.mrf.mxu0
    %v1002 = vadd.f32 %v639, %v1001
    %1003 = vdwg.mxu0
    %1004 = vmatpush.bf16.msra.mxu0 0
    %1005 = vmatpush.bf16.msra.mxu0 0
    %1006 = vmatpush.bf16.msra.mxu0 0
    %1007 = vmatpush.bf16.msra.mxu0 0
    %1008 = vmatpush.bf16.msra.mxu0 0
    %1009 = vmatpush.bf16.msra.mxu0 0
    %1010 = vmatpush.bf16.msra.mxu0 %v784
    %1011 = vmatpush.bf16.msra.mxu0 %v768
    %1012 = vmatmul.bf16.gmra.mxu0 %v820
    %v1013 = vpop.f32.mrf.mxu0
    %v1014 = vadd.f32 %v640, %v1013
    %v1015 = vpop.f32.mrf.mxu0
    %v1016 = vadd.f32 %v640, %v1015
    %1017 = vdwg.mxu0
    %1018 = vmatpush.bf16.msra.mxu0 0
    %1019 = vmatpush.bf16.msra.mxu0 0
    %1020 = vmatpush.bf16.msra.mxu0 0
    %1021 = vmatpush.bf16.msra.mxu0 0
    %1022 = vmatpush.bf16.msra.mxu0 0
    %1023 = vmatpush.bf16.msra.mxu0 0
    %1024 = vmatpush.bf16.msra.mxu0 %v785
    %1025 = vmatpush.bf16.msra.mxu0 %v769
    %1026 = vmatmul.bf16.gmra.mxu0 %v820
    %v1027 = vpop.f32.mrf.mxu0
    %v1028 = vadd.f32 %v641, %v1027
    %v1029 = vpop.f32.mrf.mxu0
    %v1030 = vadd.f32 %v641, %v1029
    %1031 = vdwg.mxu0
    %1032 = vmatpush.bf16.msra.mxu0 0
    %1033 = vmatpush.bf16.msra.mxu0 0
    %1034 = vmatpush.bf16.msra.mxu0 0
    %1035 = vmatpush.bf16.msra.mxu0 0
    %1036 = vmatpush.bf16.msra.mxu0 0
    %1037 = vmatpush.bf16.msra.mxu0 0
    %1038 = vmatpush.bf16.msra.mxu0 %v786
    %1039 = vmatpush.bf16.msra.mxu0 %v770
    %1040 = vmatmul.bf16.gmra.mxu0 %v820
    %v1041 = vpop.f32.mrf.mxu0
    %v1042 = vadd.f32 %v642, %v1041
    %v1043 = vpop.f32.mrf.mxu0
    %v1044 = vadd.f32 %v642, %v1043
    %1045 = vdwg.mxu0
    %v1046 = vmax.f32 %v832, 0.0
    %v1047 = vmax.f32 %v846, 0.0
    %v1048 = vmax.f32 %v860, 0.0
    %v1049 = vmax.f32 %v874, 0.0
    %v1050 = vmax.f32 %v888, 0.0
    %v1051 = vmax.f32 %v902, 0.0
    %v1052 = vmax.f32 %v916, 0.0
    %v1053 = vmax.f32 %v930, 0.0
    %v1054 = vmax.f32 %v944, 0.0
    %v1055 = vmax.f32 %v958, 0.0
    %v1056 = vmax.f32 %v972, 0.0
    %v1057 = vmax.f32 %v986, 0.0
    %v1058 = vmax.f32 %v1000, 0.0
    %v1059 = vmax.f32 %v1014, 0.0
    %v1060 = vmax.f32 %v1028, 0.0
    %v1061 = vmax.f32 %v1042, 0.0
    %v1062 = vmax.f32 %v834, 0.0
    %v1063 = vmax.f32 %v848, 0.0
    %v1064 = vmax.f32 %v862, 0.0
    %v1065 = vmax.f32 %v876, 0.0
    %v1066 = vmax.f32 %v890, 0.0
    %v1067 = vmax.f32 %v904, 0.0
    %v1068 = vmax.f32 %v918, 0.0
    %v1069 = vmax.f32 %v932, 0.0
    %v1070 = vmax.f32 %v946, 0.0
    %v1071 = vmax.f32 %v960, 0.0
    %v1072 = vmax.f32 %v974, 0.0
    %v1073 = vmax.f32 %v988, 0.0
    %v1074 = vmax.f32 %v1002, 0.0
    %v1075 = vmax.f32 %v1016, 0.0
    %v1076 = vmax.f32 %v1030, 0.0
    %v1077 = vmax.f32 %v1044, 0.0
    %v1078 = vpack.c.bf16 %v1062, %v1046
    %v1079 = vpack.c.bf16 %v1063, %v1047
    %v1080 = vpack.c.bf16 %v1064, %v1048
    %v1081 = vpack.c.bf16 %v1065, %v1049
    %v1082 = vpack.c.bf16 %v1066, %v1050
    %v1083 = vpack.c.bf16 %v1067, %v1051
    %v1084 = vpack.c.bf16 %v1068, %v1052
    %v1085 = vpack.c.bf16 %v1069, %v1053
    %v1086 = vpack.c.bf16 %v1070, %v1054
    %v1087 = vpack.c.bf16 %v1071, %v1055
    %v1088 = vpack.c.bf16 %v1072, %v1056
    %v1089 = vpack.c.bf16 %v1073, %v1057
    %v1090 = vpack.c.bf16 %v1074, %v1058
    %v1091 = vpack.c.bf16 %v1075, %v1059
    %v1092 = vpack.c.bf16 %v1076, %v1060
    %v1093 = vpack.c.bf16 %v1077, %v1061
    %v1094 = vld [vmem:[%s7] sm:$0xf]
    %v1095 = vld [vmem:[%s7 + $0x4] sm:$0xf]
    %v1096 = vld [vmem:[%s7 + $0x8] sm:$0xf]
    %v1097 = vld [vmem:[%s7 + $0xc] sm:$0xf]
    %v1098 = vld [vmem:[%s7 + $0x10] sm:$0xf]
    %v1099 = vld [vmem:[%s7 + $0x14] sm:$0xf]
    %v1100 = vld [vmem:[%s7 + $0x18] sm:$0xf]
    %v1101 = vld [vmem:[%s7 + $0x1c] sm:$0xf]
    %v1102 = vld [vmem:[%s7 + $0x20] sm:$0xf]
    %v1103 = vld [vmem:[%s7 + $0x24] sm:$0xf]
    %v1104 = vld [vmem:[%s7 + $0x28] sm:$0xf]
    %v1105 = vld [vmem:[%s7 + $0x2c] sm:$0xf]
    %v1106 = vld [vmem:[%s7 + $0x30] sm:$0xf]
    %v1107 = vld [vmem:[%s7 + $0x34] sm:$0xf]
    %v1108 = vld [vmem:[%s7 + $0x38] sm:$0xf]
    %v1109 = vld [vmem:[%s7 + $0x3c] sm:$0xf]
    %v1110 = vld [vmem:[%s7 + $0x40] sm:$0xf]
    %v1111 = vld [vmem:[%s7 + $0x44] sm:$0xf]
    %v1112 = vld [vmem:[%s7 + $0x48] sm:$0xf]
    %v1113 = vld [vmem:[%s7 + $0x4c] sm:$0xf]
    %v1114 = vld [vmem:[%s7 + $0x50] sm:$0xf]
    %v1115 = vld [vmem:[%s7 + $0x54] sm:$0xf]
    %v1116 = vld [vmem:[%s7 + $0x58] sm:$0xf]
    %v1117 = vld [vmem:[%s7 + $0x5c] sm:$0xf]
    %v1118 = vld [vmem:[%s7 + $0x60] sm:$0xf]
    %v1119 = vld [vmem:[%s7 + $0x64] sm:$0xf]
    %v1120 = vld [vmem:[%s7 + $0x68] sm:$0xf]
    %v1121 = vld [vmem:[%s7 + $0x6c] sm:$0xf]
    %v1122 = vld [vmem:[%s7 + $0x70] sm:$0xf]
    %v1123 = vld [vmem:[%s7 + $0x74] sm:$0xf]
    %v1124 = vld [vmem:[%s7 + $0x78] sm:$0xf]
    %v1125 = vld [vmem:[%s7 + $0x7c] sm:$0xf]
    %v1126 = vld [vmem:[%s7 + $0x80] sm:$0xf]
    %v1127 = vld [vmem:[%s7 + $0x84] sm:$0xf]
    %v1128 = vld [vmem:[%s7 + $0x88] sm:$0xf]
    %v1129 = vld [vmem:[%s7 + $0x8c] sm:$0xf]
    %v1130 = vld [vmem:[%s7 + $0x90] sm:$0xf]
    %v1131 = vld [vmem:[%s7 + $0x94] sm:$0xf]
    %v1132 = vld [vmem:[%s7 + $0x98] sm:$0xf]
    %v1133 = vld [vmem:[%s7 + $0x9c] sm:$0xf]
    %v1134 = vld [vmem:[%s7 + $0xa0] sm:$0xf]
    %v1135 = vld [vmem:[%s7 + $0xa4] sm:$0xf]
    %v1136 = vld [vmem:[%s7 + $0xa8] sm:$0xf]
    %v1137 = vld [vmem:[%s7 + $0xac] sm:$0xf]
    %v1138 = vld [vmem:[%s7 + $0xb0] sm:$0xf]
    %v1139 = vld [vmem:[%s7 + $0xb4] sm:$0xf]
    %v1140 = vld [vmem:[%s7 + $0xb8] sm:$0xf]
    %v1141 = vld [vmem:[%s7 + $0xbc] sm:$0xf]
    %v1142 = vld [vmem:[%s7 + $0xc0] sm:$0xf]
    %v1143 = vld [vmem:[%s7 + $0xc4] sm:$0xf]
    %v1144 = vld [vmem:[%s7 + $0xc8] sm:$0xf]
    %v1145 = vld [vmem:[%s7 + $0xcc] sm:$0xf]
    %v1146 = vld [vmem:[%s7 + $0xd0] sm:$0xf]
    %v1147 = vld [vmem:[%s7 + $0xd4] sm:$0xf]
    %v1148 = vld [vmem:[%s7 + $0xd8] sm:$0xf]
    %v1149 = vld [vmem:[%s7 + $0xdc] sm:$0xf]
    %v1150 = vld [vmem:[%s7 + $0xe0] sm:$0xf]
    %v1151 = vld [vmem:[%s7 + $0xe4] sm:$0xf]
    %v1152 = vld [vmem:[%s7 + $0xe8] sm:$0xf]
    %v1153 = vld [vmem:[%s7 + $0xec] sm:$0xf]
    %v1154 = vld [vmem:[%s7 + $0xf0] sm:$0xf]
    %v1155 = vld [vmem:[%s7 + $0xf4] sm:$0xf]
    %v1156 = vld [vmem:[%s7 + $0xf8] sm:$0xf]
    %v1157 = vld [vmem:[%s7 + $0xfc] sm:$0xf]
    %v1158 = vld [vmem:[%s7 + $0x100] sm:$0xf]
    %v1159 = vld [vmem:[%s7 + $0x104] sm:$0xf]
    %v1160 = vld [vmem:[%s7 + $0x108] sm:$0xf]
    %v1161 = vld [vmem:[%s7 + $0x10c] sm:$0xf]
    %v1162 = vld [vmem:[%s7 + $0x110] sm:$0xf]
    %v1163 = vld [vmem:[%s7 + $0x114] sm:$0xf]
    %v1164 = vld [vmem:[%s7 + $0x118] sm:$0xf]
    %v1165 = vld [vmem:[%s7 + $0x11c] sm:$0xf]
    %v1166 = vld [vmem:[%s7 + $0x120] sm:$0xf]
    %v1167 = vld [vmem:[%s7 + $0x124] sm:$0xf]
    %v1168 = vld [vmem:[%s7 + $0x128] sm:$0xf]
    %v1169 = vld [vmem:[%s7 + $0x12c] sm:$0xf]
    %v1170 = vld [vmem:[%s7 + $0x130] sm:$0xf]
    %v1171 = vld [vmem:[%s7 + $0x134] sm:$0xf]
    %v1172 = vld [vmem:[%s7 + $0x138] sm:$0xf]
    %v1173 = vld [vmem:[%s7 + $0x13c] sm:$0xf]
    %v1174 = vld [vmem:[%s7 + $0x140] sm:$0xf]
    %v1175 = vld [vmem:[%s7 + $0x144] sm:$0xf]
    %v1176 = vld [vmem:[%s7 + $0x148] sm:$0xf]
    %v1177 = vld [vmem:[%s7 + $0x14c] sm:$0xf]
    %v1178 = vld [vmem:[%s7 + $0x150] sm:$0xf]
    %v1179 = vld [vmem:[%s7 + $0x154] sm:$0xf]
    %v1180 = vld [vmem:[%s7 + $0x158] sm:$0xf]
    %v1181 = vld [vmem:[%s7 + $0x15c] sm:$0xf]
    %v1182 = vld [vmem:[%s7 + $0x160] sm:$0xf]
    %v1183 = vld [vmem:[%s7 + $0x164] sm:$0xf]
    %v1184 = vld [vmem:[%s7 + $0x168] sm:$0xf]
    %v1185 = vld [vmem:[%s7 + $0x16c] sm:$0xf]
    %v1186 = vld [vmem:[%s7 + $0x170] sm:$0xf]
    %v1187 = vld [vmem:[%s7 + $0x174] sm:$0xf]
    %v1188 = vld [vmem:[%s7 + $0x178] sm:$0xf]
    %v1189 = vld [vmem:[%s7 + $0x17c] sm:$0xf]
    %v1190 = vld [vmem:[%s7 + $0x180] sm:$0xf]
    %v1191 = vld [vmem:[%s7 + $0x184] sm:$0xf]
    %v1192 = vld [vmem:[%s7 + $0x188] sm:$0xf]
    %v1193 = vld [vmem:[%s7 + $0x18c] sm:$0xf]
    %v1194 = vld [vmem:[%s7 + $0x190] sm:$0xf]
    %v1195 = vld [vmem:[%s7 + $0x194] sm:$0xf]
    %v1196 = vld [vmem:[%s7 + $0x198] sm:$0xf]
    %v1197 = vld [vmem:[%s7 + $0x19c] sm:$0xf]
    %v1198 = vld [vmem:[%s7 + $0x1a0] sm:$0xf]
    %v1199 = vld [vmem:[%s7 + $0x1a4] sm:$0xf]
    %v1200 = vld [vmem:[%s7 + $0x1a8] sm:$0xf]
    %v1201 = vld [vmem:[%s7 + $0x1ac] sm:$0xf]
    %v1202 = vld [vmem:[%s7 + $0x1b0] sm:$0xf]
    %v1203 = vld [vmem:[%s7 + $0x1b4] sm:$0xf]
    %v1204 = vld [vmem:[%s7 + $0x1b8] sm:$0xf]
    %v1205 = vld [vmem:[%s7 + $0x1bc] sm:$0xf]
    %v1206 = vld [vmem:[%s7 + $0x1c0] sm:$0xf]
    %v1207 = vld [vmem:[%s7 + $0x1c4] sm:$0xf]
    %v1208 = vld [vmem:[%s7 + $0x1c8] sm:$0xf]
    %v1209 = vld [vmem:[%s7 + $0x1cc] sm:$0xf]
    %v1210 = vld [vmem:[%s7 + $0x1d0] sm:$0xf]
    %v1211 = vld [vmem:[%s7 + $0x1d4] sm:$0xf]
    %v1212 = vld [vmem:[%s7 + $0x1d8] sm:$0xf]
    %v1213 = vld [vmem:[%s7 + $0x1dc] sm:$0xf]
    %v1214 = vld [vmem:[%s7 + $0x1e0] sm:$0xf]
    %v1215 = vld [vmem:[%s7 + $0x1e4] sm:$0xf]
    %v1216 = vld [vmem:[%s7 + $0x1e8] sm:$0xf]
    %v1217 = vld [vmem:[%s7 + $0x1ec] sm:$0xf]
    %v1218 = vld [vmem:[%s7 + $0x1f0] sm:$0xf]
    %v1219 = vld [vmem:[%s7 + $0x1f4] sm:$0xf]
    %v1220 = vld [vmem:[%s7 + $0x1f8] sm:$0xf]
    %v1221 = vld [vmem:[%s7 + $0x1fc] sm:$0xf]
    %v1222 = vld [vmem:[%s7 + $0x200] sm:$0xf]
    %v1223 = vld [vmem:[%s7 + $0x204] sm:$0xf]
    %v1224 = vld [vmem:[%s7 + $0x208] sm:$0xf]
    %v1225 = vld [vmem:[%s7 + $0x20c] sm:$0xf]
    %v1226 = vld [vmem:[%s7 + $0x210] sm:$0xf]
    %v1227 = vld [vmem:[%s7 + $0x214] sm:$0xf]
    %v1228 = vld [vmem:[%s7 + $0x218] sm:$0xf]
    %v1229 = vld [vmem:[%s7 + $0x21c] sm:$0xf]
    %v1230 = vld [vmem:[%s7 + $0x220] sm:$0xf]
    %v1231 = vld [vmem:[%s7 + $0x224] sm:$0xf]
    %v1232 = vld [vmem:[%s7 + $0x228] sm:$0xf]
    %v1233 = vld [vmem:[%s7 + $0x22c] sm:$0xf]
    %v1234 = vld [vmem:[%s7 + $0x230] sm:$0xf]
    %v1235 = vld [vmem:[%s7 + $0x234] sm:$0xf]
    %v1236 = vld [vmem:[%s7 + $0x238] sm:$0xf]
    %v1237 = vld [vmem:[%s7 + $0x23c] sm:$0xf]
    %v1238 = vld [vmem:[%s7 + $0x240] sm:$0xf]
    %v1239 = vld [vmem:[%s7 + $0x244] sm:$0xf]
    %v1240 = vld [vmem:[%s7 + $0x248] sm:$0xf]
    %v1241 = vld [vmem:[%s7 + $0x24c] sm:$0xf]
    %v1242 = vld [vmem:[%s7 + $0x250] sm:$0xf]
    %v1243 = vld [vmem:[%s7 + $0x254] sm:$0xf]
    %v1244 = vld [vmem:[%s7 + $0x258] sm:$0xf]
    %v1245 = vld [vmem:[%s7 + $0x25c] sm:$0xf]
    %v1246 = vld [vmem:[%s7 + $0x260] sm:$0xf]
    %v1247 = vld [vmem:[%s7 + $0x264] sm:$0xf]
    %v1248 = vld [vmem:[%s7 + $0x268] sm:$0xf]
    %v1249 = vld [vmem:[%s7 + $0x26c] sm:$0xf]
    %v1250 = vld [vmem:[%s7 + $0x270] sm:$0xf]
    %v1251 = vld [vmem:[%s7 + $0x274] sm:$0xf]
    %v1252 = vld [vmem:[%s7 + $0x278] sm:$0xf]
    %v1253 = vld [vmem:[%s7 + $0x27c] sm:$0xf]
    %v1254 = vld [vmem:[%s7 + $0x280] sm:$0xf]
    %v1255 = vld [vmem:[%s7 + $0x284] sm:$0xf]
    %v1256 = vld [vmem:[%s7 + $0x288] sm:$0xf]
    %v1257 = vld [vmem:[%s7 + $0x28c] sm:$0xf]
    %v1258 = vld [vmem:[%s7 + $0x290] sm:$0xf]
    %v1259 = vld [vmem:[%s7 + $0x294] sm:$0xf]
    %v1260 = vld [vmem:[%s7 + $0x298] sm:$0xf]
    %v1261 = vld [vmem:[%s7 + $0x29c] sm:$0xf]
    %v1262 = vld [vmem:[%s7 + $0x2a0] sm:$0xf]
    %v1263 = vld [vmem:[%s7 + $0x2a4] sm:$0xf]
    %v1264 = vld [vmem:[%s7 + $0x2a8] sm:$0xf]
    %v1265 = vld [vmem:[%s7 + $0x2ac] sm:$0xf]
    %v1266 = vld [vmem:[%s7 + $0x2b0] sm:$0xf]
    %v1267 = vld [vmem:[%s7 + $0x2b4] sm:$0xf]
    %v1268 = vld [vmem:[%s7 + $0x2b8] sm:$0xf]
    %v1269 = vld [vmem:[%s7 + $0x2bc] sm:$0xf]
    %v1270 = vld [vmem:[%s7 + $0x2c0] sm:$0xf]
    %v1271 = vld [vmem:[%s7 + $0x2c4] sm:$0xf]
    %v1272 = vld [vmem:[%s7 + $0x2c8] sm:$0xf]
    %v1273 = vld [vmem:[%s7 + $0x2cc] sm:$0xf]
    %v1274 = vld [vmem:[%s7 + $0x2d0] sm:$0xf]
    %v1275 = vld [vmem:[%s7 + $0x2d4] sm:$0xf]
    %v1276 = vld [vmem:[%s7 + $0x2d8] sm:$0xf]
    %v1277 = vld [vmem:[%s7 + $0x2dc] sm:$0xf]
    %v1278 = vld [vmem:[%s7 + $0x2e0] sm:$0xf]
    %v1279 = vld [vmem:[%s7 + $0x2e4] sm:$0xf]
    %v1280 = vld [vmem:[%s7 + $0x2e8] sm:$0xf]
    %v1281 = vld [vmem:[%s7 + $0x2ec] sm:$0xf]
    %v1282 = vld [vmem:[%s7 + $0x2f0] sm:$0xf]
    %v1283 = vld [vmem:[%s7 + $0x2f4] sm:$0xf]
    %v1284 = vld [vmem:[%s7 + $0x2f8] sm:$0xf]
    %v1285 = vld [vmem:[%s7 + $0x2fc] sm:$0xf]
    %v1286 = vld [vmem:[%s7 + $0x300] sm:$0xf]
    %v1287 = vld [vmem:[%s7 + $0x304] sm:$0xf]
    %v1288 = vld [vmem:[%s7 + $0x308] sm:$0xf]
    %v1289 = vld [vmem:[%s7 + $0x30c] sm:$0xf]
    %v1290 = vld [vmem:[%s7 + $0x310] sm:$0xf]
    %v1291 = vld [vmem:[%s7 + $0x314] sm:$0xf]
    %v1292 = vld [vmem:[%s7 + $0x318] sm:$0xf]
    %v1293 = vld [vmem:[%s7 + $0x31c] sm:$0xf]
    %v1294 = vld [vmem:[%s7 + $0x320] sm:$0xf]
    %v1295 = vld [vmem:[%s7 + $0x324] sm:$0xf]
    %v1296 = vld [vmem:[%s7 + $0x328] sm:$0xf]
    %v1297 = vld [vmem:[%s7 + $0x32c] sm:$0xf]
    %v1298 = vld [vmem:[%s7 + $0x330] sm:$0xf]
    %v1299 = vld [vmem:[%s7 + $0x334] sm:$0xf]
    %v1300 = vld [vmem:[%s7 + $0x338] sm:$0xf]
    %v1301 = vld [vmem:[%s7 + $0x33c] sm:$0xf]
    %v1302 = vld [vmem:[%s7 + $0x340] sm:$0xf]
    %v1303 = vld [vmem:[%s7 + $0x344] sm:$0xf]
    %v1304 = vld [vmem:[%s7 + $0x348] sm:$0xf]
    %v1305 = vld [vmem:[%s7 + $0x34c] sm:$0xf]
    %v1306 = vld [vmem:[%s7 + $0x350] sm:$0xf]
    %v1307 = vld [vmem:[%s7 + $0x354] sm:$0xf]
    %v1308 = vld [vmem:[%s7 + $0x358] sm:$0xf]
    %v1309 = vld [vmem:[%s7 + $0x35c] sm:$0xf]
    %v1310 = vld [vmem:[%s7 + $0x360] sm:$0xf]
    %v1311 = vld [vmem:[%s7 + $0x364] sm:$0xf]
    %v1312 = vld [vmem:[%s7 + $0x368] sm:$0xf]
    %v1313 = vld [vmem:[%s7 + $0x36c] sm:$0xf]
    %v1314 = vld [vmem:[%s7 + $0x370] sm:$0xf]
    %v1315 = vld [vmem:[%s7 + $0x374] sm:$0xf]
    %v1316 = vld [vmem:[%s7 + $0x378] sm:$0xf]
    %v1317 = vld [vmem:[%s7 + $0x37c] sm:$0xf]
    %v1318 = vld [vmem:[%s7 + $0x380] sm:$0xf]
    %v1319 = vld [vmem:[%s7 + $0x384] sm:$0xf]
    %v1320 = vld [vmem:[%s7 + $0x388] sm:$0xf]
    %v1321 = vld [vmem:[%s7 + $0x38c] sm:$0xf]
    %v1322 = vld [vmem:[%s7 + $0x390] sm:$0xf]
    %v1323 = vld [vmem:[%s7 + $0x394] sm:$0xf]
    %v1324 = vld [vmem:[%s7 + $0x398] sm:$0xf]
    %v1325 = vld [vmem:[%s7 + $0x39c] sm:$0xf]
    %v1326 = vld [vmem:[%s7 + $0x3a0] sm:$0xf]
    %v1327 = vld [vmem:[%s7 + $0x3a4] sm:$0xf]
    %v1328 = vld [vmem:[%s7 + $0x3a8] sm:$0xf]
    %v1329 = vld [vmem:[%s7 + $0x3ac] sm:$0xf]
    %v1330 = vld [vmem:[%s7 + $0x3b0] sm:$0xf]
    %v1331 = vld [vmem:[%s7 + $0x3b4] sm:$0xf]
    %v1332 = vld [vmem:[%s7 + $0x3b8] sm:$0xf]
    %v1333 = vld [vmem:[%s7 + $0x3bc] sm:$0xf]
    %v1334 = vld [vmem:[%s7 + $0x3c0] sm:$0xf]
    %v1335 = vld [vmem:[%s7 + $0x3c4] sm:$0xf]
    %v1336 = vld [vmem:[%s7 + $0x3c8] sm:$0xf]
    %v1337 = vld [vmem:[%s7 + $0x3cc] sm:$0xf]
    %v1338 = vld [vmem:[%s7 + $0x3d0] sm:$0xf]
    %v1339 = vld [vmem:[%s7 + $0x3d4] sm:$0xf]
    %v1340 = vld [vmem:[%s7 + $0x3d8] sm:$0xf]
    %v1341 = vld [vmem:[%s7 + $0x3dc] sm:$0xf]
    %v1342 = vld [vmem:[%s7 + $0x3e0] sm:$0xf]
    %v1343 = vld [vmem:[%s7 + $0x3e4] sm:$0xf]
    %v1344 = vld [vmem:[%s7 + $0x3e8] sm:$0xf]
    %v1345 = vld [vmem:[%s7 + $0x3ec] sm:$0xf]
    %v1346 = vld [vmem:[%s7 + $0x3f0] sm:$0xf]
    %v1347 = vld [vmem:[%s7 + $0x3f4] sm:$0xf]
    %v1348 = vld [vmem:[%s7 + $0x3f8] sm:$0xf]
    %v1349 = vld [vmem:[%s7 + $0x3fc] sm:$0xf]
    %v1350 = vperm.slane %v33, 7
    %v1607 = vunpack.c.l.b16 %v1094
    %v1608 = vunpack.c.l.b16 %v1095
    %v1609 = vunpack.c.l.b16 %v1096
    %v1610 = vunpack.c.l.b16 %v1097
    %v1611 = vunpack.c.l.b16 %v1098
    %v1612 = vunpack.c.l.b16 %v1099
    %v1613 = vunpack.c.l.b16 %v1100
    %v1614 = vunpack.c.l.b16 %v1101
    %v1615 = vunpack.c.l.b16 %v1102
    %v1616 = vunpack.c.l.b16 %v1103
    %v1617 = vunpack.c.l.b16 %v1104
    %v1618 = vunpack.c.l.b16 %v1105
    %v1619 = vunpack.c.l.b16 %v1106
    %v1620 = vunpack.c.l.b16 %v1107
    %v1621 = vunpack.c.l.b16 %v1108
    %v1622 = vunpack.c.l.b16 %v1109
    %v1623 = vunpack.c.l.b16 %v1110
    %v1624 = vunpack.c.l.b16 %v1111
    %v1625 = vunpack.c.l.b16 %v1112
    %v1626 = vunpack.c.l.b16 %v1113
    %v1627 = vunpack.c.l.b16 %v1114
    %v1628 = vunpack.c.l.b16 %v1115
    %v1629 = vunpack.c.l.b16 %v1116
    %v1630 = vunpack.c.l.b16 %v1117
    %v1631 = vunpack.c.l.b16 %v1118
    %v1632 = vunpack.c.l.b16 %v1119
    %v1633 = vunpack.c.l.b16 %v1120
    %v1634 = vunpack.c.l.b16 %v1121
    %v1635 = vunpack.c.l.b16 %v1122
    %v1636 = vunpack.c.l.b16 %v1123
    %v1637 = vunpack.c.l.b16 %v1124
    %v1638 = vunpack.c.l.b16 %v1125
    %v1639 = vunpack.c.l.b16 %v1126
    %v1640 = vunpack.c.l.b16 %v1127
    %v1641 = vunpack.c.l.b16 %v1128
    %v1642 = vunpack.c.l.b16 %v1129
    %v1643 = vunpack.c.l.b16 %v1130
    %v1644 = vunpack.c.l.b16 %v1131
    %v1645 = vunpack.c.l.b16 %v1132
    %v1646 = vunpack.c.l.b16 %v1133
    %v1647 = vunpack.c.l.b16 %v1134
    %v1648 = vunpack.c.l.b16 %v1135
    %v1649 = vunpack.c.l.b16 %v1136
    %v1650 = vunpack.c.l.b16 %v1137
    %v1651 = vunpack.c.l.b16 %v1138
    %v1652 = vunpack.c.l.b16 %v1139
    %v1653 = vunpack.c.l.b16 %v1140
    %v1654 = vunpack.c.l.b16 %v1141
    %v1655 = vunpack.c.l.b16 %v1142
    %v1656 = vunpack.c.l.b16 %v1143
    %v1657 = vunpack.c.l.b16 %v1144
    %v1658 = vunpack.c.l.b16 %v1145
    %v1659 = vunpack.c.l.b16 %v1146
    %v1660 = vunpack.c.l.b16 %v1147
    %v1661 = vunpack.c.l.b16 %v1148
    %v1662 = vunpack.c.l.b16 %v1149
    %v1663 = vunpack.c.l.b16 %v1150
    %v1664 = vunpack.c.l.b16 %v1151
    %v1665 = vunpack.c.l.b16 %v1152
    %v1666 = vunpack.c.l.b16 %v1153
    %v1667 = vunpack.c.l.b16 %v1154
    %v1668 = vunpack.c.l.b16 %v1155
    %v1669 = vunpack.c.l.b16 %v1156
    %v1670 = vunpack.c.l.b16 %v1157
    %v1671 = vunpack.c.l.b16 %v1158
    %v1672 = vunpack.c.l.b16 %v1159
    %v1673 = vunpack.c.l.b16 %v1160
    %v1674 = vunpack.c.l.b16 %v1161
    %v1675 = vunpack.c.l.b16 %v1162
    %v1676 = vunpack.c.l.b16 %v1163
    %v1677 = vunpack.c.l.b16 %v1164
    %v1678 = vunpack.c.l.b16 %v1165
    %v1679 = vunpack.c.l.b16 %v1166
    %v1680 = vunpack.c.l.b16 %v1167
    %v1681 = vunpack.c.l.b16 %v1168
    %v1682 = vunpack.c.l.b16 %v1169
    %v1683 = vunpack.c.l.b16 %v1170
    %v1684 = vunpack.c.l.b16 %v1171
    %v1685 = vunpack.c.l.b16 %v1172
    %v1686 = vunpack.c.l.b16 %v1173
    %v1687 = vunpack.c.l.b16 %v1174
    %v1688 = vunpack.c.l.b16 %v1175
    %v1689 = vunpack.c.l.b16 %v1176
    %v1690 = vunpack.c.l.b16 %v1177
    %v1691 = vunpack.c.l.b16 %v1178
    %v1692 = vunpack.c.l.b16 %v1179
    %v1693 = vunpack.c.l.b16 %v1180
    %v1694 = vunpack.c.l.b16 %v1181
    %v1695 = vunpack.c.l.b16 %v1182
    %v1696 = vunpack.c.l.b16 %v1183
    %v1697 = vunpack.c.l.b16 %v1184
    %v1698 = vunpack.c.l.b16 %v1185
    %v1699 = vunpack.c.l.b16 %v1186
    %v1700 = vunpack.c.l.b16 %v1187
    %v1701 = vunpack.c.l.b16 %v1188
    %v1702 = vunpack.c.l.b16 %v1189
    %v1703 = vunpack.c.l.b16 %v1190
    %v1704 = vunpack.c.l.b16 %v1191
    %v1705 = vunpack.c.l.b16 %v1192
    %v1706 = vunpack.c.l.b16 %v1193
    %v1707 = vunpack.c.l.b16 %v1194
    %v1708 = vunpack.c.l.b16 %v1195
    %v1709 = vunpack.c.l.b16 %v1196
    %v1710 = vunpack.c.l.b16 %v1197
    %v1711 = vunpack.c.l.b16 %v1198
    %v1712 = vunpack.c.l.b16 %v1199
    %v1713 = vunpack.c.l.b16 %v1200
    %v1714 = vunpack.c.l.b16 %v1201
    %v1715 = vunpack.c.l.b16 %v1202
    %v1716 = vunpack.c.l.b16 %v1203
    %v1717 = vunpack.c.l.b16 %v1204
    %v1718 = vunpack.c.l.b16 %v1205
    %v1719 = vunpack.c.l.b16 %v1206
    %v1720 = vunpack.c.l.b16 %v1207
    %v1721 = vunpack.c.l.b16 %v1208
    %v1722 = vunpack.c.l.b16 %v1209
    %v1723 = vunpack.c.l.b16 %v1210
    %v1724 = vunpack.c.l.b16 %v1211
    %v1725 = vunpack.c.l.b16 %v1212
    %v1726 = vunpack.c.l.b16 %v1213
    %v1727 = vunpack.c.l.b16 %v1214
    %v1728 = vunpack.c.l.b16 %v1215
    %v1729 = vunpack.c.l.b16 %v1216
    %v1730 = vunpack.c.l.b16 %v1217
    %v1731 = vunpack.c.l.b16 %v1218
    %v1732 = vunpack.c.l.b16 %v1219
    %v1733 = vunpack.c.l.b16 %v1220
    %v1734 = vunpack.c.l.b16 %v1221
    %v1735 = vunpack.c.l.b16 %v1222
    %v1736 = vunpack.c.l.b16 %v1223
    %v1737 = vunpack.c.l.b16 %v1224
    %v1738 = vunpack.c.l.b16 %v1225
    %v1739 = vunpack.c.l.b16 %v1226
    %v1740 = vunpack.c.l.b16 %v1227
    %v1741 = vunpack.c.l.b16 %v1228
    %v1742 = vunpack.c.l.b16 %v1229
    %v1743 = vunpack.c.l.b16 %v1230
    %v1744 = vunpack.c.l.b16 %v1231
    %v1745 = vunpack.c.l.b16 %v1232
    %v1746 = vunpack.c.l.b16 %v1233
    %v1747 = vunpack.c.l.b16 %v1234
    %v1748 = vunpack.c.l.b16 %v1235
    %v1749 = vunpack.c.l.b16 %v1236
    %v1750 = vunpack.c.l.b16 %v1237
    %v1751 = vunpack.c.l.b16 %v1238
    %v1752 = vunpack.c.l.b16 %v1239
    %v1753 = vunpack.c.l.b16 %v1240
    %v1754 = vunpack.c.l.b16 %v1241
    %v1755 = vunpack.c.l.b16 %v1242
    %v1756 = vunpack.c.l.b16 %v1243
    %v1757 = vunpack.c.l.b16 %v1244
    %v1758 = vunpack.c.l.b16 %v1245
    %v1759 = vunpack.c.l.b16 %v1246
    %v1760 = vunpack.c.l.b16 %v1247
    %v1761 = vunpack.c.l.b16 %v1248
    %v1762 = vunpack.c.l.b16 %v1249
    %v1763 = vunpack.c.l.b16 %v1250
    %v1764 = vunpack.c.l.b16 %v1251
    %v1765 = vunpack.c.l.b16 %v1252
    %v1766 = vunpack.c.l.b16 %v1253
    %v1767 = vunpack.c.l.b16 %v1254
    %v1768 = vunpack.c.l.b16 %v1255
    %v1769 = vunpack.c.l.b16 %v1256
    %v1770 = vunpack.c.l.b16 %v1257
    %v1771 = vunpack.c.l.b16 %v1258
    %v1772 = vunpack.c.l.b16 %v1259
    %v1773 = vunpack.c.l.b16 %v1260
    %v1774 = vunpack.c.l.b16 %v1261
    %v1775 = vunpack.c.l.b16 %v1262
    %v1776 = vunpack.c.l.b16 %v1263
    %v1777 = vunpack.c.l.b16 %v1264
    %v1778 = vunpack.c.l.b16 %v1265
    %v1779 = vunpack.c.l.b16 %v1266
    %v1780 = vunpack.c.l.b16 %v1267
    %v1781 = vunpack.c.l.b16 %v1268
    %v1782 = vunpack.c.l.b16 %v1269
    %v1783 = vunpack.c.l.b16 %v1270
    %v1784 = vunpack.c.l.b16 %v1271
    %v1785 = vunpack.c.l.b16 %v1272
    %v1786 = vunpack.c.l.b16 %v1273
    %v1787 = vunpack.c.l.b16 %v1274
    %v1788 = vunpack.c.l.b16 %v1275
    %v1789 = vunpack.c.l.b16 %v1276
    %v1790 = vunpack.c.l.b16 %v1277
    %v1791 = vunpack.c.l.b16 %v1278
    %v1792 = vunpack.c.l.b16 %v1279
    %v1793 = vunpack.c.l.b16 %v1280
    %v1794 = vunpack.c.l.b16 %v1281
    %v1795 = vunpack.c.l.b16 %v1282
    %v1796 = vunpack.c.l.b16 %v1283
    %v1797 = vunpack.c.l.b16 %v1284
    %v1798 = vunpack.c.l.b16 %v1285
    %v1799 = vunpack.c.l.b16 %v1286
    %v1800 = vunpack.c.l.b16 %v1287
    %v1801 = vunpack.c.l.b16 %v1288
    %v1802 = vunpack.c.l.b16 %v1289
    %v1803 = vunpack.c.l.b16 %v1290
    %v1804 = vunpack.c.l.b16 %v1291
    %v1805 = vunpack.c.l.b16 %v1292
    %v1806 = vunpack.c.l.b16 %v1293
    %v1807 = vunpack.c.l.b16 %v1294
    %v1808 = vunpack.c.l.b16 %v1295
    %v1809 = vunpack.c.l.b16 %v1296
    %v1810 = vunpack.c.l.b16 %v1297
    %v1811 = vunpack.c.l.b16 %v1298
    %v1812 = vunpack.c.l.b16 %v1299
    %v1813 = vunpack.c.l.b16 %v1300
    %v1814 = vunpack.c.l.b16 %v1301
    %v1815 = vunpack.c.l.b16 %v1302
    %v1816 = vunpack.c.l.b16 %v1303
    %v1817 = vunpack.c.l.b16 %v1304
    %v1818 = vunpack.c.l.b16 %v1305
    %v1819 = vunpack.c.l.b16 %v1306
    %v1820 = vunpack.c.l.b16 %v1307
    %v1821 = vunpack.c.l.b16 %v1308
    %v1822 = vunpack.c.l.b16 %v1309
    %v1823 = vunpack.c.l.b16 %v1310
    %v1824 = vunpack.c.l.b16 %v1311
    %v1825 = vunpack.c.l.b16 %v1312
    %v1826 = vunpack.c.l.b16 %v1313
    %v1827 = vunpack.c.l.b16 %v1314
    %v1828 = vunpack.c.l.b16 %v1315
    %v1829 = vunpack.c.l.b16 %v1316
    %v1830 = vunpack.c.l.b16 %v1317
    %v1831 = vunpack.c.l.b16 %v1318
    %v1832 = vunpack.c.l.b16 %v1319
    %v1833 = vunpack.c.l.b16 %v1320
    %v1834 = vunpack.c.l.b16 %v1321
    %v1835 = vunpack.c.l.b16 %v1322
    %v1836 = vunpack.c.l.b16 %v1323
    %v1837 = vunpack.c.l.b16 %v1324
    %v1838 = vunpack.c.l.b16 %v1325
    %v1839 = vunpack.c.l.b16 %v1326
    %v1840 = vunpack.c.l.b16 %v1327
    %v1841 = vunpack.c.l.b16 %v1328
    %v1842 = vunpack.c.l.b16 %v1329
    %v1843 = vunpack.c.l.b16 %v1330
    %v1844 = vunpack.c.l.b16 %v1331
    %v1845 = vunpack.c.l.b16 %v1332
    %v1846 = vunpack.c.l.b16 %v1333
    %v1847 = vunpack.c.l.b16 %v1334
    %v1848 = vunpack.c.l.b16 %v1335
    %v1849 = vunpack.c.l.b16 %v1336
    %v1850 = vunpack.c.l.b16 %v1337
    %v1851 = vunpack.c.l.b16 %v1338
    %v1852 = vunpack.c.l.b16 %v1339
    %v1853 = vunpack.c.l.b16 %v1340
    %v1854 = vunpack.c.l.b16 %v1341
    %v1855 = vunpack.c.l.b16 %v1342
    %v1856 = vunpack.c.l.b16 %v1343
    %v1857 = vunpack.c.l.b16 %v1344
    %v1858 = vunpack.c.l.b16 %v1345
    %v1859 = vunpack.c.l.b16 %v1346
    %v1860 = vunpack.c.l.b16 %v1347
    %v1861 = vunpack.c.l.b16 %v1348
    %v1862 = vunpack.c.l.b16 %v1349
    %v1863 = vpack.c.b16 %v1608, %v1607
    %v1864 = vpack.c.b16 %v1610, %v1609
    %v1865 = vpack.c.b16 %v1612, %v1611
    %v1866 = vpack.c.b16 %v1614, %v1613
    %v1867 = vpack.c.b16 %v1616, %v1615
    %v1868 = vpack.c.b16 %v1618, %v1617
    %v1869 = vpack.c.b16 %v1620, %v1619
    %v1870 = vpack.c.b16 %v1622, %v1621
    %v1871 = vpack.c.b16 %v1624, %v1623
    %v1872 = vpack.c.b16 %v1626, %v1625
    %v1873 = vpack.c.b16 %v1628, %v1627
    %v1874 = vpack.c.b16 %v1630, %v1629
    %v1875 = vpack.c.b16 %v1632, %v1631
    %v1876 = vpack.c.b16 %v1634, %v1633
    %v1877 = vpack.c.b16 %v1636, %v1635
    %v1878 = vpack.c.b16 %v1638, %v1637
    %v1879 = vpack.c.b16 %v1640, %v1639
    %v1880 = vpack.c.b16 %v1642, %v1641
    %v1881 = vpack.c.b16 %v1644, %v1643
    %v1882 = vpack.c.b16 %v1646, %v1645
    %v1883 = vpack.c.b16 %v1648, %v1647
    %v1884 = vpack.c.b16 %v1650, %v1649
    %v1885 = vpack.c.b16 %v1652, %v1651
    %v1886 = vpack.c.b16 %v1654, %v1653
    %v1887 = vpack.c.b16 %v1656, %v1655
    %v1888 = vpack.c.b16 %v1658, %v1657
    %v1889 = vpack.c.b16 %v1660, %v1659
    %v1890 = vpack.c.b16 %v1662, %v1661
    %v1891 = vpack.c.b16 %v1664, %v1663
    %v1892 = vpack.c.b16 %v1666, %v1665
    %v1893 = vpack.c.b16 %v1668, %v1667
    %v1894 = vpack.c.b16 %v1670, %v1669
    %v1895 = vpack.c.b16 %v1672, %v1671
    %v1896 = vpack.c.b16 %v1674, %v1673
    %v1897 = vpack.c.b16 %v1676, %v1675
    %v1898 = vpack.c.b16 %v1678, %v1677
    %v1899 = vpack.c.b16 %v1680, %v1679
    %v1900 = vpack.c.b16 %v1682, %v1681
    %v1901 = vpack.c.b16 %v1684, %v1683
    %v1902 = vpack.c.b16 %v1686, %v1685
    %v1903 = vpack.c.b16 %v1688, %v1687
    %v1904 = vpack.c.b16 %v1690, %v1689
    %v1905 = vpack.c.b16 %v1692, %v1691
    %v1906 = vpack.c.b16 %v1694, %v1693
    %v1907 = vpack.c.b16 %v1696, %v1695
    %v1908 = vpack.c.b16 %v1698, %v1697
    %v1909 = vpack.c.b16 %v1700, %v1699
    %v1910 = vpack.c.b16 %v1702, %v1701
    %v1911 = vpack.c.b16 %v1704, %v1703
    %v1912 = vpack.c.b16 %v1706, %v1705
    %v1913 = vpack.c.b16 %v1708, %v1707
    %v1914 = vpack.c.b16 %v1710, %v1709
    %v1915 = vpack.c.b16 %v1712, %v1711
    %v1916 = vpack.c.b16 %v1714, %v1713
    %v1917 = vpack.c.b16 %v1716, %v1715
    %v1918 = vpack.c.b16 %v1718, %v1717
    %v1919 = vpack.c.b16 %v1720, %v1719
    %v1920 = vpack.c.b16 %v1722, %v1721
    %v1921 = vpack.c.b16 %v1724, %v1723
    %v1922 = vpack.c.b16 %v1726, %v1725
    %v1923 = vpack.c.b16 %v1728, %v1727
    %v1924 = vpack.c.b16 %v1730, %v1729
    %v1925 = vpack.c.b16 %v1732, %v1731
    %v1926 = vpack.c.b16 %v1734, %v1733
    %v1927 = vpack.c.b16 %v1736, %v1735
    %v1928 = vpack.c.b16 %v1738, %v1737
    %v1929 = vpack.c.b16 %v1740, %v1739
    %v1930 = vpack.c.b16 %v1742, %v1741
    %v1931 = vpack.c.b16 %v1744, %v1743
    %v1932 = vpack.c.b16 %v1746, %v1745
    %v1933 = vpack.c.b16 %v1748, %v1747
    %v1934 = vpack.c.b16 %v1750, %v1749
    %v1935 = vpack.c.b16 %v1752, %v1751
    %v1936 = vpack.c.b16 %v1754, %v1753
    %v1937 = vpack.c.b16 %v1756, %v1755
    %v1938 = vpack.c.b16 %v1758, %v1757
    %v1939 = vpack.c.b16 %v1760, %v1759
    %v1940 = vpack.c.b16 %v1762, %v1761
    %v1941 = vpack.c.b16 %v1764, %v1763
    %v1942 = vpack.c.b16 %v1766, %v1765
    %v1943 = vpack.c.b16 %v1768, %v1767
    %v1944 = vpack.c.b16 %v1770, %v1769
    %v1945 = vpack.c.b16 %v1772, %v1771
    %v1946 = vpack.c.b16 %v1774, %v1773
    %v1947 = vpack.c.b16 %v1776, %v1775
    %v1948 = vpack.c.b16 %v1778, %v1777
    %v1949 = vpack.c.b16 %v1780, %v1779
    %v1950 = vpack.c.b16 %v1782, %v1781
    %v1951 = vpack.c.b16 %v1784, %v1783
    %v1952 = vpack.c.b16 %v1786, %v1785
    %v1953 = vpack.c.b16 %v1788, %v1787
    %v1954 = vpack.c.b16 %v1790, %v1789
    %v1955 = vpack.c.b16 %v1792, %v1791
    %v1956 = vpack.c.b16 %v1794, %v1793
    %v1957 = vpack.c.b16 %v1796, %v1795
    %v1958 = vpack.c.b16 %v1798, %v1797
    %v1959 = vpack.c.b16 %v1800, %v1799
    %v1960 = vpack.c.b16 %v1802, %v1801
    %v1961 = vpack.c.b16 %v1804, %v1803
    %v1962 = vpack.c.b16 %v1806, %v1805
    %v1963 = vpack.c.b16 %v1808, %v1807
    %v1964 = vpack.c.b16 %v1810, %v1809
    %v1965 = vpack.c.b16 %v1812, %v1811
    %v1966 = vpack.c.b16 %v1814, %v1813
    %v1967 = vpack.c.b16 %v1816, %v1815
    %v1968 = vpack.c.b16 %v1818, %v1817
    %v1969 = vpack.c.b16 %v1820, %v1819
    %v1970 = vpack.c.b16 %v1822, %v1821
    %v1971 = vpack.c.b16 %v1824, %v1823
    %v1972 = vpack.c.b16 %v1826, %v1825
    %v1973 = vpack.c.b16 %v1828, %v1827
    %v1974 = vpack.c.b16 %v1830, %v1829
    %v1975 = vpack.c.b16 %v1832, %v1831
    %v1976 = vpack.c.b16 %v1834, %v1833
    %v1977 = vpack.c.b16 %v1836, %v1835
    %v1978 = vpack.c.b16 %v1838, %v1837
    %v1979 = vpack.c.b16 %v1840, %v1839
    %v1980 = vpack.c.b16 %v1842, %v1841
    %v1981 = vpack.c.b16 %v1844, %v1843
    %v1982 = vpack.c.b16 %v1846, %v1845
    %v1983 = vpack.c.b16 %v1848, %v1847
    %v1984 = vpack.c.b16 %v1850, %v1849
    %v1985 = vpack.c.b16 %v1852, %v1851
    %v1986 = vpack.c.b16 %v1854, %v1853
    %v1987 = vpack.c.b16 %v1856, %v1855
    %v1988 = vpack.c.b16 %v1858, %v1857
    %v1989 = vpack.c.b16 %v1860, %v1859
    %v1990 = vpack.c.b16 %v1862, %v1861
    %2119 = vmatpush.bf16.msra.mxu0 %v1870
    %2120 = vmatpush.bf16.msra.mxu0 %v1869
    %2121 = vmatpush.bf16.msra.mxu0 %v1868
    %2122 = vmatpush.bf16.msra.mxu0 %v1867
    %2123 = vmatpush.bf16.msra.mxu0 %v1866
    %2124 = vmatpush.bf16.msra.mxu0 %v1865
    %2125 = vmatpush.bf16.msra.mxu0 %v1864
    %2126 = vmatpush.bf16.msra.mxu0 %v1863
    %2127 = vmatmul.bf16.gmra.mxu0 %v1078
    %v2128 = vpop.f32.mrf.mxu0
    %v2129 = vadd.f32 %v1350, %v2128
    %v2130 = vpop.f32.mrf.mxu0
    %v2131 = vadd.f32 %v1350, %v2130
    %2132 = vdwg.mxu0
    %2133 = vmatpush.bf16.msra.mxu0 %v1878
    %2134 = vmatpush.bf16.msra.mxu0 %v1877
    %2135 = vmatpush.bf16.msra.mxu0 %v1876
    %2136 = vmatpush.bf16.msra.mxu0 %v1875
    %2137 = vmatpush.bf16.msra.mxu0 %v1874
    %2138 = vmatpush.bf16.msra.mxu0 %v1873
    %2139 = vmatpush.bf16.msra.mxu0 %v1872
    %2140 = vmatpush.bf16.msra.mxu0 %v1871
    %2141 = vmatmul.bf16.gmra.mxu0 %v1079
    %v2142 = vpop.f32.mrf.mxu0
    %v2143 = vadd.f32 %v2129, %v2142
    %v2144 = vpop.f32.mrf.mxu0
    %v2145 = vadd.f32 %v2131, %v2144
    %2146 = vdwg.mxu0
    %2147 = vmatpush.bf16.msra.mxu0 %v1886
    %2148 = vmatpush.bf16.msra.mxu0 %v1885
    %2149 = vmatpush.bf16.msra.mxu0 %v1884
    %2150 = vmatpush.bf16.msra.mxu0 %v1883
    %2151 = vmatpush.bf16.msra.mxu0 %v1882
    %2152 = vmatpush.bf16.msra.mxu0 %v1881
    %2153 = vmatpush.bf16.msra.mxu0 %v1880
    %2154 = vmatpush.bf16.msra.mxu0 %v1879
    %2155 = vmatmul.bf16.gmra.mxu0 %v1080
    %v2156 = vpop.f32.mrf.mxu0
    %v2157 = vadd.f32 %v2143, %v2156
    %v2158 = vpop.f32.mrf.mxu0
    %v2159 = vadd.f32 %v2145, %v2158
    %2160 = vdwg.mxu0
    %2161 = vmatpush.bf16.msra.mxu0 %v1894
    %2162 = vmatpush.bf16.msra.mxu0 %v1893
    %2163 = vmatpush.bf16.msra.mxu0 %v1892
    %2164 = vmatpush.bf16.msra.mxu0 %v1891
    %2165 = vmatpush.bf16.msra.mxu0 %v1890
    %2166 = vmatpush.bf16.msra.mxu0 %v1889
    %2167 = vmatpush.bf16.msra.mxu0 %v1888
    %2168 = vmatpush.bf16.msra.mxu0 %v1887
    %2169 = vmatmul.bf16.gmra.mxu0 %v1081
    %v2170 = vpop.f32.mrf.mxu0
    %v2171 = vadd.f32 %v2157, %v2170
    %v2172 = vpop.f32.mrf.mxu0
    %v2173 = vadd.f32 %v2159, %v2172
    %2174 = vdwg.mxu0
    %2175 = vmatpush.bf16.msra.mxu0 %v1902
    %2176 = vmatpush.bf16.msra.mxu0 %v1901
    %2177 = vmatpush.bf16.msra.mxu0 %v1900
    %2178 = vmatpush.bf16.msra.mxu0 %v1899
    %2179 = vmatpush.bf16.msra.mxu0 %v1898
    %2180 = vmatpush.bf16.msra.mxu0 %v1897
    %2181 = vmatpush.bf16.msra.mxu0 %v1896
    %2182 = vmatpush.bf16.msra.mxu0 %v1895
    %2183 = vmatmul.bf16.gmra.mxu0 %v1082
    %v2184 = vpop.f32.mrf.mxu0
    %v2185 = vadd.f32 %v2171, %v2184
    %v2186 = vpop.f32.mrf.mxu0
    %v2187 = vadd.f32 %v2173, %v2186
    %2188 = vdwg.mxu0
    %2189 = vmatpush.bf16.msra.mxu0 %v1910
    %2190 = vmatpush.bf16.msra.mxu0 %v1909
    %2191 = vmatpush.bf16.msra.mxu0 %v1908
    %2192 = vmatpush.bf16.msra.mxu0 %v1907
    %2193 = vmatpush.bf16.msra.mxu0 %v1906
    %2194 = vmatpush.bf16.msra.mxu0 %v1905
    %2195 = vmatpush.bf16.msra.mxu0 %v1904
    %2196 = vmatpush.bf16.msra.mxu0 %v1903
    %2197 = vmatmul.bf16.gmra.mxu0 %v1083
    %v2198 = vpop.f32.mrf.mxu0
    %v2199 = vadd.f32 %v2185, %v2198
    %v2200 = vpop.f32.mrf.mxu0
    %v2201 = vadd.f32 %v2187, %v2200
    %2202 = vdwg.mxu0
    %2203 = vmatpush.bf16.msra.mxu0 %v1918
    %2204 = vmatpush.bf16.msra.mxu0 %v1917
    %2205 = vmatpush.bf16.msra.mxu0 %v1916
    %2206 = vmatpush.bf16.msra.mxu0 %v1915
    %2207 = vmatpush.bf16.msra.mxu0 %v1914
    %2208 = vmatpush.bf16.msra.mxu0 %v1913
    %2209 = vmatpush.bf16.msra.mxu0 %v1912
    %2210 = vmatpush.bf16.msra.mxu0 %v1911
    %2211 = vmatmul.bf16.gmra.mxu0 %v1084
    %v2212 = vpop.f32.mrf.mxu0
    %v2213 = vadd.f32 %v2199, %v2212
    %v2214 = vpop.f32.mrf.mxu0
    %v2215 = vadd.f32 %v2201, %v2214
    %2216 = vdwg.mxu0
    %2217 = vmatpush.bf16.msra.mxu0 %v1926
    %2218 = vmatpush.bf16.msra.mxu0 %v1925
    %2219 = vmatpush.bf16.msra.mxu0 %v1924
    %2220 = vmatpush.bf16.msra.mxu0 %v1923
    %2221 = vmatpush.bf16.msra.mxu0 %v1922
    %2222 = vmatpush.bf16.msra.mxu0 %v1921
    %2223 = vmatpush.bf16.msra.mxu0 %v1920
    %2224 = vmatpush.bf16.msra.mxu0 %v1919
    %2225 = vmatmul.bf16.gmra.mxu0 %v1085
    %v2226 = vpop.f32.mrf.mxu0
    %v2227 = vadd.f32 %v2213, %v2226
    %v2228 = vpop.f32.mrf.mxu0
    %v2229 = vadd.f32 %v2215, %v2228
    %2230 = vdwg.mxu0
    %2231 = vmatpush.bf16.msra.mxu0 %v1934
    %2232 = vmatpush.bf16.msra.mxu0 %v1933
    %2233 = vmatpush.bf16.msra.mxu0 %v1932
    %2234 = vmatpush.bf16.msra.mxu0 %v1931
    %2235 = vmatpush.bf16.msra.mxu0 %v1930
    %2236 = vmatpush.bf16.msra.mxu0 %v1929
    %2237 = vmatpush.bf16.msra.mxu0 %v1928
    %2238 = vmatpush.bf16.msra.mxu0 %v1927
    %2239 = vmatmul.bf16.gmra.mxu0 %v1086
    %v2240 = vpop.f32.mrf.mxu0
    %v2241 = vadd.f32 %v2227, %v2240
    %v2242 = vpop.f32.mrf.mxu0
    %v2243 = vadd.f32 %v2229, %v2242
    %2244 = vdwg.mxu0
    %2245 = vmatpush.bf16.msra.mxu0 %v1942
    %2246 = vmatpush.bf16.msra.mxu0 %v1941
    %2247 = vmatpush.bf16.msra.mxu0 %v1940
    %2248 = vmatpush.bf16.msra.mxu0 %v1939
    %2249 = vmatpush.bf16.msra.mxu0 %v1938
    %2250 = vmatpush.bf16.msra.mxu0 %v1937
    %2251 = vmatpush.bf16.msra.mxu0 %v1936
    %2252 = vmatpush.bf16.msra.mxu0 %v1935
    %2253 = vmatmul.bf16.gmra.mxu0 %v1087
    %v2254 = vpop.f32.mrf.mxu0
    %v2255 = vadd.f32 %v2241, %v2254
    %v2256 = vpop.f32.mrf.mxu0
    %v2257 = vadd.f32 %v2243, %v2256
    %2258 = vdwg.mxu0
    %2259 = vmatpush.bf16.msra.mxu0 %v1950
    %2260 = vmatpush.bf16.msra.mxu0 %v1949
    %2261 = vmatpush.bf16.msra.mxu0 %v1948
    %2262 = vmatpush.bf16.msra.mxu0 %v1947
    %2263 = vmatpush.bf16.msra.mxu0 %v1946
    %2264 = vmatpush.bf16.msra.mxu0 %v1945
    %2265 = vmatpush.bf16.msra.mxu0 %v1944
    %2266 = vmatpush.bf16.msra.mxu0 %v1943
    %2267 = vmatmul.bf16.gmra.mxu0 %v1088
    %v2268 = vpop.f32.mrf.mxu0
    %v2269 = vadd.f32 %v2255, %v2268
    %v2270 = vpop.f32.mrf.mxu0
    %v2271 = vadd.f32 %v2257, %v2270
    %2272 = vdwg.mxu0
    %2273 = vmatpush.bf16.msra.mxu0 %v1958
    %2274 = vmatpush.bf16.msra.mxu0 %v1957
    %2275 = vmatpush.bf16.msra.mxu0 %v1956
    %2276 = vmatpush.bf16.msra.mxu0 %v1955
    %2277 = vmatpush.bf16.msra.mxu0 %v1954
    %2278 = vmatpush.bf16.msra.mxu0 %v1953
    %2279 = vmatpush.bf16.msra.mxu0 %v1952
    %2280 = vmatpush.bf16.msra.mxu0 %v1951
    %2281 = vmatmul.bf16.gmra.mxu0 %v1089
    %v2282 = vpop.f32.mrf.mxu0
    %v2283 = vadd.f32 %v2269, %v2282
    %v2284 = vpop.f32.mrf.mxu0
    %v2285 = vadd.f32 %v2271, %v2284
    %2286 = vdwg.mxu0
    %2287 = vmatpush.bf16.msra.mxu0 %v1966
    %2288 = vmatpush.bf16.msra.mxu0 %v1965
    %2289 = vmatpush.bf16.msra.mxu0 %v1964
    %2290 = vmatpush.bf16.msra.mxu0 %v1963
    %2291 = vmatpush.bf16.msra.mxu0 %v1962
    %2292 = vmatpush.bf16.msra.mxu0 %v1961
    %2293 = vmatpush.bf16.msra.mxu0 %v1960
    %2294 = vmatpush.bf16.msra.mxu0 %v1959
    %2295 = vmatmul.bf16.gmra.mxu0 %v1090
    %v2296 = vpop.f32.mrf.mxu0
    %v2297 = vadd.f32 %v2283, %v2296
    %v2298 = vpop.f32.mrf.mxu0
    %v2299 = vadd.f32 %v2285, %v2298
    %2300 = vdwg.mxu0
    %2301 = vmatpush.bf16.msra.mxu0 %v1974
    %2302 = vmatpush.bf16.msra.mxu0 %v1973
    %2303 = vmatpush.bf16.msra.mxu0 %v1972
    %2304 = vmatpush.bf16.msra.mxu0 %v1971
    %2305 = vmatpush.bf16.msra.mxu0 %v1970
    %2306 = vmatpush.bf16.msra.mxu0 %v1969
    %2307 = vmatpush.bf16.msra.mxu0 %v1968
    %2308 = vmatpush.bf16.msra.mxu0 %v1967
    %2309 = vmatmul.bf16.gmra.mxu0 %v1091
    %v2310 = vpop.f32.mrf.mxu0
    %v2311 = vadd.f32 %v2297, %v2310
    %v2312 = vpop.f32.mrf.mxu0
    %v2313 = vadd.f32 %v2299, %v2312
    %2314 = vdwg.mxu0
    %2315 = vmatpush.bf16.msra.mxu0 %v1982
    %2316 = vmatpush.bf16.msra.mxu0 %v1981
    %2317 = vmatpush.bf16.msra.mxu0 %v1980
    %2318 = vmatpush.bf16.msra.mxu0 %v1979
    %2319 = vmatpush.bf16.msra.mxu0 %v1978
    %2320 = vmatpush.bf16.msra.mxu0 %v1977
    %2321 = vmatpush.bf16.msra.mxu0 %v1976
    %2322 = vmatpush.bf16.msra.mxu0 %v1975
    %2323 = vmatmul.bf16.gmra.mxu0 %v1092
    %v2324 = vpop.f32.mrf.mxu0
    %v2325 = vadd.f32 %v2311, %v2324
    %v2326 = vpop.f32.mrf.mxu0
    %v2327 = vadd.f32 %v2313, %v2326
    %2328 = vdwg.mxu0
    %2329 = vmatpush.bf16.msra.mxu0 %v1990
    %2330 = vmatpush.bf16.msra.mxu0 %v1989
    %2331 = vmatpush.bf16.msra.mxu0 %v1988
    %2332 = vmatpush.bf16.msra.mxu0 %v1987
    %2333 = vmatpush.bf16.msra.mxu0 %v1986
    %2334 = vmatpush.bf16.msra.mxu0 %v1985
    %2335 = vmatpush.bf16.msra.mxu0 %v1984
    %2336 = vmatpush.bf16.msra.mxu0 %v1983
    %2337 = vmatmul.bf16.gmra.mxu0 %v1093
    %v2338 = vpop.f32.mrf.mxu0
    %v2339 = vadd.f32 %v2325, %v2338
    %v2340 = vpop.f32.mrf.mxu0
    %v2341 = vadd.f32 %v2327, %v2340
    %2342 = vdwg.mxu0
    %v2343 = vadd.f32 %v588, %v2339
    %v2344 = vadd.f32 %v589, %v2341
    %v2345 = vsel %vm34, %v2343, 0.0
    %2346 = vadd.xlane.f32.xlu0 %v2345
    %v2347 = vpop.xlane.xlu0 %2346
    %v2348 = vsel %vm34, %v2344, 0.0
    %2349 = vadd.xlane.f32.xlu0 %v2348
    %v2350 = vpop.xlane.xlu0 %2349
    %v2351 = vmul.f32 %v2347, %v47
    %v2352 = vmul.f32 %v2350, %v47
    %v2353 = vsub.f32 %v2343, %v2351
    %v2354 = vsub.f32 %v2344, %v2352
    %v2355 = vmul.f32 %v2353, %v2353
    %v2356 = vmul.f32 %v2354, %v2354
    %v2357 = vsel %vm34, %v2355, 0.0
    %2358 = vadd.xlane.f32.xlu0 %v2357
    %v2359 = vpop.xlane.xlu0 %2358
    %v2360 = vsel %vm34, %v2356, 0.0
    %2361 = vadd.xlane.f32.xlu0 %v2360
    %v2362 = vpop.xlane.xlu0 %2361
    %v2363 = vmul.f32 %v2359, %v47
    %v2364 = vmul.f32 %v2362, %v47
    %v2365 = vadd.f32 %v2363, 1e-05
    %v2366 = vadd.f32 %v2364, 1e-05
    %v2367 = vrsqrt.pop %v2365
    %v2368 = vmul.f32 %v2367, %v2365
    %v2369 = vmul.f32 %v2368, %v2367
    %v2370 = vmul.f32 0.5, %v2369
    %v2371 = vsub.f32 1.5, %v2370
    %v2372 = vmul.f32 %v2367, %v2371
    %vm2373 = vweird.f32 %v2365
    %vm2374 = vweird.f32 %v2367
    %vm2375 = vmor %vm2373, %vm2374
    %v2376 = vsel %vm2375, %v2367, %v2372
    %v2377 = vrsqrt.pop %v2366
    %v2378 = vmul.f32 %v2377, %v2366
    %v2379 = vmul.f32 %v2378, %v2377
    %v2380 = vmul.f32 0.5, %v2379
    %v2381 = vsub.f32 1.5, %v2380
    %v2382 = vmul.f32 %v2377, %v2381
    %vm2383 = vweird.f32 %v2366
    %vm2384 = vweird.f32 %v2377
    %vm2385 = vmor %vm2383, %vm2384
    %v2386 = vsel %vm2385, %v2377, %v2382
    %v2387 = vmul.f32 %v2353, %v2376
    %v2388 = vmul.f32 %v2354, %v2386
    %v2389 = vperm.slane %v33, 4
    %v2390 = vmul.f32 %v2387, %v2389
    %v2391 = vmul.f32 %v2388, %v2389
    %v2392 = vperm.slane %v33, 5
    %v2393 = vadd.f32 %v2390, %v2392
    %v2394 = vadd.f32 %v2391, %v2392
    %2395 = vst.msk [vmem:[#allocation3] sm:$0xff] %vm34, %v2393
    %2396 = vst.msk [vmem:[#allocation3 + $0x8] sm:$0xff] %vm34, %v2394
    // Predicated region
    $region34: #{tpu_custom_call.1} parent=1 // pred_check
      _
    $region35: #{tpu_custom_call.1} parent=1 // pred_check_branch
      %2398 = sbr.rel (0) target = $region37
    $region36: #{tpu_custom_call.1} parent=1 // pred_region
      %2400 = vsyncadd [#allocation4], 0
      %s2401 = sshll.u32 [#allocation3], 4
      %s2402 = int_to_ptr.vmem [resolvable:$true] %s2401
      %s2403 = sshll.u32 %s8, 4
      %s2404 = int_to_ptr.hbm [resolvable:$true] %s2403
      %2409 = dma.vmem_to_hbm [thread:$0]  %s2402, 256, %s2404, [#allocation4], 128, 128, 8
    $region37: #{tpu_custom_call.1} parent=1 // pred_fallthru
      _
    // Predicated region
    $region38: #{tpu_custom_call.1} parent=1 // pred_check
      _
    $region39: #{tpu_custom_call.1} parent=1 // pred_check_branch
      %2411 = sbr.rel (0) target = $region41
    $region40: #{tpu_custom_call.1} parent=1 // pred_region
      %2413 = dma.done [#allocation4], 256
    $region41: #{tpu_custom_call.1} parent=1 // pred_fallthru
      _
    %2414 = vsyncpa [#allocation4], 1

</llo_original>
